<compile_context>
chip_gen: v5e
topology: v5e:2x2
jax: 0.10.0
libtpu: 0.0.40
codegen_flags: <defaults>
</compile_context>

<pallas_src>
import jax
import jax.numpy as jnp
from jax.experimental import pallas as pl
from jax.experimental.pallas import tpu as pltpu


# ----------------------------------------------------------------------------
# Config (small synthetic sizes consistent with the module's forward)
# ----------------------------------------------------------------------------
BATCH = 2
LATENT_CHANNELS = 16
HIDDEN_CHANNELS = (32, 16, 8)        # hidden_channels; H0 = conv in_channels
OUT_CHANNELS = 3                     # mesh vertex coordinates
N_VERTS = 16                         # conv.blocks[0].n_verts_in
VERTS_PER_LEVEL = (16, 32, 64, 128)  # decoder upsamples vertices each block
SPIRAL_K = 4                         # spiral length per vertex
DTYPE = jnp.float32
MXU_DTYPE = jnp.bfloat16             # MXU operand dtype (f32 accumulation)
LN_EPS = 1e-5


# ----------------------------------------------------------------------------
# Single fused Pallas kernel: proj MLP + folded mesh-conv decoder
# ----------------------------------------------------------------------------
def _fused_decoder_kernel(z_ref, *refs):
    """refs = [w0,b0,g0,be0, w1,b1,g1,be1, w2,b2,g2,be2,
               M0,bf0, M1,bf1, M2,bf2, out_ref]

    proj:    h = ReLU(LayerNorm(h @ W_l + b_l)) x3        (last one -> (B, 512))
    decoder: h = act(h @ M_b + b_flat_b)  x3, act = ReLU, ReLU, tanh
             where M_b folds upsample + spiral gather + spiral-conv weights.
    Output is the flat (B, V_last*C_out) = (B, 384) tensor (lane-dense store).
    """
    o_ref = refs[-1]
    prm = refs[:-1]
    n_proj = 3

    h = z_ref[...].astype(jnp.float32)

    # ---- self._proj : 3 x (Linear -> LayerNorm -> ReLU), all VMEM/vreg resident
    for li in range(n_proj):
        w_r, b_r, g_r, be_r = prm[4 * li:4 * li + 4]
        y = jnp.dot(h.astype(MXU_DTYPE), w_r[...],
                    preferred_element_type=jnp.float32) + b_r[...]
        mu = jnp.mean(y, axis=-1, keepdims=True)
        var = jnp.mean(jnp.square(y - mu), axis=-1, keepdims=True)
        y = (y - mu) * jax.lax.rsqrt(var + LN_EPS)
        h = jnp.maximum(y * g_r[...] + be_r[...], 0.0)     # activation == ReLU

    # ---- self._conv : 3 folded decoder blocks, pure lane-dense MXU matmuls
    conv_prm = prm[4 * n_proj:]
    n_blocks = len(conv_prm) // 2
    for bi in range(n_blocks):
        m_r, bias_r = conv_prm[2 * bi], conv_prm[2 * bi + 1]
        y = jnp.dot(h.astype(MXU_DTYPE), m_r[...],
                    preferred_element_type=jnp.float32) + bias_r[...]
        # hidden blocks: ReLU; last block: output_activation (tanh)
        h = jnp.tanh(y) if bi == n_blocks - 1 else jnp.maximum(y, 0.0)

    o_ref[...] = h.astype(o_ref.dtype)


# ----------------------------------------------------------------------------
# Deterministic parameter / template construction (host-side folding)
# ----------------------------------------------------------------------------
def _init_linear(key, fan_in, fan_out):
    kw, kb = jax.random.split(key)
    scale = 1.0 / jnp.sqrt(jnp.float32(fan_in))
    w = jax.random.normal(kw, (fan_in, fan_out), DTYPE) * scale
    b = jax.random.normal(kb, (1, fan_out), DTYPE) * 0.01
    return w, b


def _make_spiral_indices(n_verts, k):
    # deterministic circular spirals: vertex v gathers [v, v+1, ..., v+K-1] mod V
    return (jnp.arange(n_verts)[:, None] + jnp.arange(k)[None, :]) % n_verts


def _make_upsample_matrix(v_out, v_in):
    # deterministic 2x upsampling: each new vertex blends two coarse parents
    o = jnp.arange(v_out)
    p0 = (o // 2) % v_in
    p1 = (p0 + 1) % v_in
    return (0.75 * jax.nn.one_hot(p0, v_in, dtype=DTYPE)
            + 0.25 * jax.nn.one_hot(p1, v_in, dtype=DTYPE))


def build_params(seed=0):
    key = jax.random.PRNGKey(seed)
    keys = jax.random.split(key, 16)
    params = {"proj": [], "conv": []}

    # MLP proj: latent -> [2*latent, 2*latent, n_verts * H0], LayerNorm + ReLU
    proj_dims = [LATENT_CHANNELS,
                 LATENT_CHANNELS * 2,
                 LATENT_CHANNELS * 2,
                 N_VERTS * HIDDEN_CHANNELS[0]]
    for li in range(3):
        w, b = _init_linear(keys[li], proj_dims[li], proj_dims[li + 1])
        params["proj"].append({
            "w": w.astype(MXU_DTYPE),                       # MXU operand: bf16
            "b": b,                                         # f32
            "gamma": jnp.ones((1, proj_dims[li + 1]), DTYPE),
            "beta": jnp.zeros((1, proj_dims[li + 1]), DTYPE),
        })

    # Mesh-conv decoder blocks: in_channels = H0, hidden = hidden[1:] + (out,)
    conv_channels = [HIDDEN_CHANNELS[0]] + list(HIDDEN_CHANNELS[1:]) + [OUT_CHANNELS]
    for bi in range(len(conv_channels) - 1):
        c_in, c_out = conv_channels[bi], conv_channels[bi + 1]
        v_in, v_out = VERTS_PER_LEVEL[bi], VERTS_PER_LEVEL[bi + 1]
        u = _make_upsample_matrix(v_out, v_in)                  # (Vo, Vi)
        spiral = _make_spiral_indices(v_out, SPIRAL_K)          # (Vo, K)
        w, b = _init_linear(keys[4 + bi], SPIRAL_K * c_in, c_out)
        # Fold spiral gather into the upsample: UK[k] = U[spiral[:, k], :]
        uk = jnp.take(u, spiral.T, axis=0)                      # (K, Vo, Vi)
        wk = w.reshape(SPIRAL_K, c_in, c_out)                   # per-offset weight
        # Fold everything into one matrix (f32 fold, bf16 storage):
        #   M[(vi,ci),(vo,co)] = sum_k UK_k[vo,vi] * W_k[ci,co]
        #   so  y_flat = x_flat @ M + b_flat  with x_flat[(vi,ci)] = x[vi, ci]
        m = jnp.einsum("kov,kic->vioc", uk, wk).reshape(v_in * c_in, v_out * c_out)
        b_flat = jnp.tile(b, (1, v_out))                        # (1, Vo*Co), f32
        params["conv"].append({"M": m.astype(MXU_DTYPE), "b_flat": b_flat})
    return params


# ----------------------------------------------------------------------------
# Forward pass (single pallas_call)
# ----------------------------------------------------------------------------
def mesh_conv_decoder_forward(z, params):
    assert z.ndim == 2
    bsz = z.shape[0]

    args = []
    for layer in params["proj"]:
        args += [layer["w"], layer["b"], layer["gamma"], layer["beta"]]
    for blk in params["conv"]:
        args += [blk["M"], blk["b_flat"]]

    vmem_spec = pl.BlockSpec(memory_space=pltpu.MemorySpace.VMEM)
    out_flat = pl.pallas_call(
        _fused_decoder_kernel,
        out_shape=jax.ShapeDtypeStruct(
            (bsz, VERTS_PER_LEVEL[-1] * OUT_CHANNELS), z.dtype),
        in_specs=[vmem_spec] * (1 + len(args)),     # whole arrays, VMEM resident
        out_specs=vmem_spec,                        # lane-dense (B, 384) store
    )(z, *args)

    # Free metadata reshape to the module's (B, V, 3) output layout.
    return out_flat.reshape(bsz, VERTS_PER_LEVEL[-1], OUT_CHANNELS)


# ----------------------------------------------------------------------------
# Main
# ----------------------------------------------------------------------------
if __name__ == "__main__":
    params = build_params(seed=0)
    z = jax.random.normal(jax.random.PRNGKey(0), (BATCH, LATENT_CHANNELS), DTYPE)

    fwd = jax.jit(lambda zz: mesh_conv_decoder_forward(zz, params))
    out = jax.block_until_ready(fwd(z))

    expected_shape = (BATCH, VERTS_PER_LEVEL[-1], OUT_CHANNELS)
    assert out.shape == expected_shape, (out.shape, expected_shape)
    assert out.dtype == DTYPE
    assert bool(jnp.all(jnp.isfinite(out)))
    print("KERNEL_OK")
</pallas_src>

<mosaic_0001>
module attributes {stable_mosaic.version = 11 : i64} {
  func.func @_fused_decoder_kernel(%arg0: memref<2x16xf32, #tpu.memory_space<vmem>>, %arg1: memref<16x32xbf16, #tpu.memory_space<vmem>>, %arg2: memref<1x32xf32, #tpu.memory_space<vmem>>, %arg3: memref<1x32xf32, #tpu.memory_space<vmem>>, %arg4: memref<1x32xf32, #tpu.memory_space<vmem>>, %arg5: memref<32x32xbf16, #tpu.memory_space<vmem>>, %arg6: memref<1x32xf32, #tpu.memory_space<vmem>>, %arg7: memref<1x32xf32, #tpu.memory_space<vmem>>, %arg8: memref<1x32xf32, #tpu.memory_space<vmem>>, %arg9: memref<32x512xbf16, #tpu.memory_space<vmem>>, %arg10: memref<1x512xf32, #tpu.memory_space<vmem>>, %arg11: memref<1x512xf32, #tpu.memory_space<vmem>>, %arg12: memref<1x512xf32, #tpu.memory_space<vmem>>, %arg13: memref<512x512xbf16, #tpu.memory_space<vmem>>, %arg14: memref<1x512xf32, #tpu.memory_space<vmem>>, %arg15: memref<512x512xbf16, #tpu.memory_space<vmem>>, %arg16: memref<1x512xf32, #tpu.memory_space<vmem>>, %arg17: memref<512x384xbf16, #tpu.memory_space<vmem>>, %arg18: memref<1x384xf32, #tpu.memory_space<vmem>>, %arg19: memref<2x384xf32, #tpu.memory_space<vmem>>) attributes {dimension_semantics = [], scalar_prefetch = 0 : i64, scratch_operands = 0 : i64, tpu.core_type = #tpu.core_type<tc>} {
    %c0 = arith.constant 0 : index
    %c0_0 = arith.constant 0 : index
    %0 = vector.load %arg0[%c0, %c0_0] : memref<2x16xf32, #tpu.memory_space<vmem>>, vector<2x16xf32>
    %1 = arith.truncf %0 : vector<2x16xf32> to vector<2x16xbf16>
    %c0_1 = arith.constant 0 : index
    %c0_2 = arith.constant 0 : index
    %2 = vector.load %arg1[%c0_1, %c0_2] : memref<16x32xbf16, #tpu.memory_space<vmem>>, vector<16x32xbf16>
    %cst = arith.constant dense<0.000000e+00> : vector<2x32xf32>
    %3 = tpu.matmul %1, %2, %cst {dimension_numbers = #tpu.dot_dimension_numbers<[1], [0], [0], [1], [0, 0, 1, 1], [], []>} : vector<2x16xbf16>, vector<16x32xbf16>, vector<2x32xf32> -> vector<2x32xf32>
    %c0_3 = arith.constant 0 : index
    %c0_4 = arith.constant 0 : index
    %4 = vector.load %arg2[%c0_3, %c0_4] : memref<1x32xf32, #tpu.memory_space<vmem>>, vector<1x32xf32>
    %5 = vector.broadcast %4 : vector<1x32xf32> to vector<2x32xf32>
    %6 = arith.addf %3, %5 : vector<2x32xf32>
    %cst_5 = arith.constant dense<0.000000e+00> : vector<2xf32>
    %7 = vector.multi_reduction <add>, %6, %cst_5 [1] : vector<2x32xf32> to vector<2xf32>
    %8 = vector.shape_cast %7 : vector<2xf32> to vector<2x1xf32>
    %cst_6 = arith.constant 3.200000e+01 : f32
    %9 = vector.broadcast %cst_6 : f32 to vector<2x1xf32>
    %10 = arith.divf %8, %9 : vector<2x1xf32>
    %11 = vector.broadcast %10 : vector<2x1xf32> to vector<2x32xf32>
    %12 = arith.subf %6, %11 : vector<2x32xf32>
    %13 = arith.mulf %12, %12 : vector<2x32xf32>
    %cst_7 = arith.constant dense<0.000000e+00> : vector<2xf32>
    %14 = vector.multi_reduction <add>, %13, %cst_7 [1] : vector<2x32xf32> to vector<2xf32>
    %15 = vector.shape_cast %14 : vector<2xf32> to vector<2x1xf32>
    %cst_8 = arith.constant 3.200000e+01 : f32
    %16 = vector.broadcast %cst_8 : f32 to vector<2x1xf32>
    %17 = arith.divf %15, %16 : vector<2x1xf32>
    %18 = vector.broadcast %10 : vector<2x1xf32> to vector<2x32xf32>
    %19 = arith.subf %6, %18 : vector<2x32xf32>
    %cst_9 = arith.constant 9.99999974E-6 : f32
    %20 = vector.broadcast %cst_9 : f32 to vector<2x1xf32>
    %21 = arith.addf %17, %20 : vector<2x1xf32>
    %22 = math.rsqrt %21 : vector<2x1xf32>
    %23 = vector.broadcast %22 : vector<2x1xf32> to vector<2x32xf32>
    %24 = arith.mulf %19, %23 : vector<2x32xf32>
    %c0_10 = arith.constant 0 : index
    %c0_11 = arith.constant 0 : index
    %25 = vector.load %arg3[%c0_10, %c0_11] : memref<1x32xf32, #tpu.memory_space<vmem>>, vector<1x32xf32>
    %26 = vector.broadcast %25 : vector<1x32xf32> to vector<2x32xf32>
    %27 = arith.mulf %24, %26 : vector<2x32xf32>
    %c0_12 = arith.constant 0 : index
    %c0_13 = arith.constant 0 : index
    %28 = vector.load %arg4[%c0_12, %c0_13] : memref<1x32xf32, #tpu.memory_space<vmem>>, vector<1x32xf32>
    %29 = vector.broadcast %28 : vector<1x32xf32> to vector<2x32xf32>
    %30 = arith.addf %27, %29 : vector<2x32xf32>
    %cst_14 = arith.constant 0.000000e+00 : f32
    %31 = vector.broadcast %cst_14 : f32 to vector<2x32xf32>
    %32 = arith.maximumf %30, %31 : vector<2x32xf32>
    %33 = arith.truncf %32 : vector<2x32xf32> to vector<2x32xbf16>
    %c0_15 = arith.constant 0 : index
    %c0_16 = arith.constant 0 : index
    %34 = vector.load %arg5[%c0_15, %c0_16] : memref<32x32xbf16, #tpu.memory_space<vmem>>, vector<32x32xbf16>
    %cst_17 = arith.constant dense<0.000000e+00> : vector<2x32xf32>
    %35 = tpu.matmul %33, %34, %cst_17 {dimension_numbers = #tpu.dot_dimension_numbers<[1], [0], [0], [1], [0, 0, 1, 1], [], []>} : vector<2x32xbf16>, vector<32x32xbf16>, vector<2x32xf32> -> vector<2x32xf32>
    %c0_18 = arith.constant 0 : index
    %c0_19 = arith.constant 0 : index
    %36 = vector.load %arg6[%c0_18, %c0_19] : memref<1x32xf32, #tpu.memory_space<vmem>>, vector<1x32xf32>
    %37 = vector.broadcast %36 : vector<1x32xf32> to vector<2x32xf32>
    %38 = arith.addf %35, %37 : vector<2x32xf32>
    %cst_20 = arith.constant dense<0.000000e+00> : vector<2xf32>
    %39 = vector.multi_reduction <add>, %38, %cst_20 [1] : vector<2x32xf32> to vector<2xf32>
    %40 = vector.shape_cast %39 : vector<2xf32> to vector<2x1xf32>
    %cst_21 = arith.constant 3.200000e+01 : f32
    %41 = vector.broadcast %cst_21 : f32 to vector<2x1xf32>
    %42 = arith.divf %40, %41 : vector<2x1xf32>
    %43 = vector.broadcast %42 : vector<2x1xf32> to vector<2x32xf32>
    %44 = arith.subf %38, %43 : vector<2x32xf32>
    %45 = arith.mulf %44, %44 : vector<2x32xf32>
    %cst_22 = arith.constant dense<0.000000e+00> : vector<2xf32>
    %46 = vector.multi_reduction <add>, %45, %cst_22 [1] : vector<2x32xf32> to vector<2xf32>
    %47 = vector.shape_cast %46 : vector<2xf32> to vector<2x1xf32>
    %cst_23 = arith.constant 3.200000e+01 : f32
    %48 = vector.broadcast %cst_23 : f32 to vector<2x1xf32>
    %49 = arith.divf %47, %48 : vector<2x1xf32>
    %50 = vector.broadcast %42 : vector<2x1xf32> to vector<2x32xf32>
    %51 = arith.subf %38, %50 : vector<2x32xf32>
    %cst_24 = arith.constant 9.99999974E-6 : f32
    %52 = vector.broadcast %cst_24 : f32 to vector<2x1xf32>
    %53 = arith.addf %49, %52 : vector<2x1xf32>
    %54 = math.rsqrt %53 : vector<2x1xf32>
    %55 = vector.broadcast %54 : vector<2x1xf32> to vector<2x32xf32>
    %56 = arith.mulf %51, %55 : vector<2x32xf32>
    %c0_25 = arith.constant 0 : index
    %c0_26 = arith.constant 0 : index
    %57 = vector.load %arg7[%c0_25, %c0_26] : memref<1x32xf32, #tpu.memory_space<vmem>>, vector<1x32xf32>
    %58 = vector.broadcast %57 : vector<1x32xf32> to vector<2x32xf32>
    %59 = arith.mulf %56, %58 : vector<2x32xf32>
    %c0_27 = arith.constant 0 : index
    %c0_28 = arith.constant 0 : index
    %60 = vector.load %arg8[%c0_27, %c0_28] : memref<1x32xf32, #tpu.memory_space<vmem>>, vector<1x32xf32>
    %61 = vector.broadcast %60 : vector<1x32xf32> to vector<2x32xf32>
    %62 = arith.addf %59, %61 : vector<2x32xf32>
    %cst_29 = arith.constant 0.000000e+00 : f32
    %63 = vector.broadcast %cst_29 : f32 to vector<2x32xf32>
    %64 = arith.maximumf %62, %63 : vector<2x32xf32>
    %65 = arith.truncf %64 : vector<2x32xf32> to vector<2x32xbf16>
    %c0_30 = arith.constant 0 : index
    %c0_31 = arith.constant 0 : index
    %66 = vector.load %arg9[%c0_30, %c0_31] : memref<32x512xbf16, #tpu.memory_space<vmem>>, vector<32x512xbf16>
    %cst_32 = arith.constant dense<0.000000e+00> : vector<2x512xf32>
    %67 = tpu.matmul %65, %66, %cst_32 {dimension_numbers = #tpu.dot_dimension_numbers<[1], [0], [0], [1], [0, 0, 1, 1], [], []>} : vector<2x32xbf16>, vector<32x512xbf16>, vector<2x512xf32> -> vector<2x512xf32>
    %c0_33 = arith.constant 0 : index
    %c0_34 = arith.constant 0 : index
    %68 = vector.load %arg10[%c0_33, %c0_34] : memref<1x512xf32, #tpu.memory_space<vmem>>, vector<1x512xf32>
    %69 = vector.broadcast %68 : vector<1x512xf32> to vector<2x512xf32>
    %70 = arith.addf %67, %69 : vector<2x512xf32>
    %cst_35 = arith.constant dense<0.000000e+00> : vector<2xf32>
    %71 = vector.multi_reduction <add>, %70, %cst_35 [1] : vector<2x512xf32> to vector<2xf32>
    %72 = vector.shape_cast %71 : vector<2xf32> to vector<2x1xf32>
    %cst_36 = arith.constant 5.120000e+02 : f32
    %73 = vector.broadcast %cst_36 : f32 to vector<2x1xf32>
    %74 = arith.divf %72, %73 : vector<2x1xf32>
    %75 = vector.broadcast %74 : vector<2x1xf32> to vector<2x512xf32>
    %76 = arith.subf %70, %75 : vector<2x512xf32>
    %77 = arith.mulf %76, %76 : vector<2x512xf32>
    %cst_37 = arith.constant dense<0.000000e+00> : vector<2xf32>
    %78 = vector.multi_reduction <add>, %77, %cst_37 [1] : vector<2x512xf32> to vector<2xf32>
    %79 = vector.shape_cast %78 : vector<2xf32> to vector<2x1xf32>
    %cst_38 = arith.constant 5.120000e+02 : f32
    %80 = vector.broadcast %cst_38 : f32 to vector<2x1xf32>
    %81 = arith.divf %79, %80 : vector<2x1xf32>
    %82 = vector.broadcast %74 : vector<2x1xf32> to vector<2x512xf32>
    %83 = arith.subf %70, %82 : vector<2x512xf32>
    %cst_39 = arith.constant 9.99999974E-6 : f32
    %84 = vector.broadcast %cst_39 : f32 to vector<2x1xf32>
    %85 = arith.addf %81, %84 : vector<2x1xf32>
    %86 = math.rsqrt %85 : vector<2x1xf32>
    %87 = vector.broadcast %86 : vector<2x1xf32> to vector<2x512xf32>
    %88 = arith.mulf %83, %87 : vector<2x512xf32>
    %c0_40 = arith.constant 0 : index
    %c0_41 = arith.constant 0 : index
    %89 = vector.load %arg11[%c0_40, %c0_41] : memref<1x512xf32, #tpu.memory_space<vmem>>, vector<1x512xf32>
    %90 = vector.broadcast %89 : vector<1x512xf32> to vector<2x512xf32>
    %91 = arith.mulf %88, %90 : vector<2x512xf32>
    %c0_42 = arith.constant 0 : index
    %c0_43 = arith.constant 0 : index
    %92 = vector.load %arg12[%c0_42, %c0_43] : memref<1x512xf32, #tpu.memory_space<vmem>>, vector<1x512xf32>
    %93 = vector.broadcast %92 : vector<1x512xf32> to vector<2x512xf32>
    %94 = arith.addf %91, %93 : vector<2x512xf32>
    %cst_44 = arith.constant 0.000000e+00 : f32
    %95 = vector.broadcast %cst_44 : f32 to vector<2x512xf32>
    %96 = arith.maximumf %94, %95 : vector<2x512xf32>
    %97 = arith.truncf %96 : vector<2x512xf32> to vector<2x512xbf16>
    %c0_45 = arith.constant 0 : index
    %c0_46 = arith.constant 0 : index
    %98 = vector.load %arg13[%c0_45, %c0_46] : memref<512x512xbf16, #tpu.memory_space<vmem>>, vector<512x512xbf16>
    %cst_47 = arith.constant dense<0.000000e+00> : vector<2x512xf32>
    %99 = tpu.matmul %97, %98, %cst_47 {dimension_numbers = #tpu.dot_dimension_numbers<[1], [0], [0], [1], [0, 0, 1, 1], [], []>} : vector<2x512xbf16>, vector<512x512xbf16>, vector<2x512xf32> -> vector<2x512xf32>
    %c0_48 = arith.constant 0 : index
    %c0_49 = arith.constant 0 : index
    %100 = vector.load %arg14[%c0_48, %c0_49] : memref<1x512xf32, #tpu.memory_space<vmem>>, vector<1x512xf32>
    %101 = vector.broadcast %100 : vector<1x512xf32> to vector<2x512xf32>
    %102 = arith.addf %99, %101 : vector<2x512xf32>
    %cst_50 = arith.constant 0.000000e+00 : f32
    %103 = vector.broadcast %cst_50 : f32 to vector<2x512xf32>
    %104 = arith.maximumf %102, %103 : vector<2x512xf32>
    %105 = arith.truncf %104 : vector<2x512xf32> to vector<2x512xbf16>
    %c0_51 = arith.constant 0 : index
    %c0_52 = arith.constant 0 : index
    %106 = vector.load %arg15[%c0_51, %c0_52] : memref<512x512xbf16, #tpu.memory_space<vmem>>, vector<512x512xbf16>
    %cst_53 = arith.constant dense<0.000000e+00> : vector<2x512xf32>
    %107 = tpu.matmul %105, %106, %cst_53 {dimension_numbers = #tpu.dot_dimension_numbers<[1], [0], [0], [1], [0, 0, 1, 1], [], []>} : vector<2x512xbf16>, vector<512x512xbf16>, vector<2x512xf32> -> vector<2x512xf32>
    %c0_54 = arith.constant 0 : index
    %c0_55 = arith.constant 0 : index
    %108 = vector.load %arg16[%c0_54, %c0_55] : memref<1x512xf32, #tpu.memory_space<vmem>>, vector<1x512xf32>
    %109 = vector.broadcast %108 : vector<1x512xf32> to vector<2x512xf32>
    %110 = arith.addf %107, %109 : vector<2x512xf32>
    %cst_56 = arith.constant 0.000000e+00 : f32
    %111 = vector.broadcast %cst_56 : f32 to vector<2x512xf32>
    %112 = arith.maximumf %110, %111 : vector<2x512xf32>
    %113 = arith.truncf %112 : vector<2x512xf32> to vector<2x512xbf16>
    %c0_57 = arith.constant 0 : index
    %c0_58 = arith.constant 0 : index
    %114 = vector.load %arg17[%c0_57, %c0_58] : memref<512x384xbf16, #tpu.memory_space<vmem>>, vector<512x384xbf16>
    %cst_59 = arith.constant dense<0.000000e+00> : vector<2x384xf32>
    %115 = tpu.matmul %113, %114, %cst_59 {dimension_numbers = #tpu.dot_dimension_numbers<[1], [0], [0], [1], [0, 0, 1, 1], [], []>} : vector<2x512xbf16>, vector<512x384xbf16>, vector<2x384xf32> -> vector<2x384xf32>
    %c0_60 = arith.constant 0 : index
    %c0_61 = arith.constant 0 : index
    %116 = vector.load %arg18[%c0_60, %c0_61] : memref<1x384xf32, #tpu.memory_space<vmem>>, vector<1x384xf32>
    %117 = vector.broadcast %116 : vector<1x384xf32> to vector<2x384xf32>
    %118 = arith.addf %115, %117 : vector<2x384xf32>
    %119 = math.tanh %118 : vector<2x384xf32>
    %c0_62 = arith.constant 0 : index
    %c0_63 = arith.constant 0 : index
    %120 = vector.load %arg19[%c0_62, %c0_63] : memref<2x384xf32, #tpu.memory_space<vmem>>, vector<2x384xf32>
    tpu.vector_store %arg19[%c0_62, %c0_63], %119 {strides = array<i32>} : memref<2x384xf32, #tpu.memory_space<vmem>>, vector<2x384xf32>,
    return
  }
}

</mosaic_0001>

<llo_original>
// kernel: _lambda_.1
$region0: #{_lambda_.1}
  #allocation0 [shape = 'u32[]', space=smem, size = 0x4, offset = 0x4, fixed_abs, tag = 'smem constant byte address 0x4 - core index']
  #allocation1 [shape = 'u32[72,128]{1,0:T(1,128)}', space=vmem, size = 0x9000, scoped, tag = 'internal scratch']
  %s0 = inlined_call_operand.hbm [shape: f32[2,16], index: 0, kind: input, shape index: {}]
  %s1 = inlined_call_operand.hbm [shape: bf16[16,32], index: 1, kind: input, shape index: {}]
  %s2 = inlined_call_operand.hbm [shape: f32[1,32], index: 2, kind: input, shape index: {}]
  %s3 = inlined_call_operand.vmem [shape: f32[1,32], index: 3, kind: input, shape index: {}, may-alias: {3,7}]
  %s4 = inlined_call_operand.vmem [shape: f32[1,32], index: 4, kind: input, shape index: {}, may-alias: {4,8}]
  %s5 = inlined_call_operand.vmem [shape: bf16[32,32], index: 5, kind: input, shape index: {}]
  %s6 = inlined_call_operand.hbm [shape: f32[1,32], index: 6, kind: input, shape index: {}]
  %s7 = inlined_call_operand.vmem [shape: f32[1,32], index: 7, kind: input, shape index: {}, may-alias: {3,7}]
  %s8 = inlined_call_operand.vmem [shape: f32[1,32], index: 8, kind: input, shape index: {}, may-alias: {4,8}]
  %s9 = inlined_call_operand.hbm [shape: bf16[32,512], index: 9, kind: input, shape index: {}]
  %s10 = inlined_call_operand.hbm [shape: f32[1,512], index: 10, kind: input, shape index: {}]
  %s11 = inlined_call_operand.vmem [shape: f32[1,512], index: 11, kind: input, shape index: {}]
  %s12 = inlined_call_operand.vmem [shape: f32[1,512], index: 12, kind: input, shape index: {}]
  %s13 = inlined_call_operand.hbm [shape: bf16[512,512], index: 13, kind: input, shape index: {}]
  %s14 = inlined_call_operand.hbm [shape: f32[1,512], index: 14, kind: input, shape index: {}]
  %s15 = inlined_call_operand.hbm [shape: bf16[512,512], index: 15, kind: input, shape index: {}]
  %s16 = inlined_call_operand.vmem [shape: f32[1,512], index: 16, kind: input, shape index: {}]
  %s17 = inlined_call_operand.hbm [shape: bf16[512,384], index: 17, kind: input, shape index: {}]
  %s18 = inlined_call_operand.vmem [shape: f32[1,384], index: 18, kind: input, shape index: {}]
  %s19 = inlined_call_operand.vmem [shape: f32[2,384], index: 19, kind: output, shape index: {}]
  %s20 = sld [smem:[#allocation0]]
  $region126: #{_lambda_.1} parent=0
    _
  %s22 = ssub.s32 1, %s20
  %s23 = scalar_select 0, %s22, %s20
  $region1: #{_lambda_.1} parent=0
    #allocation2 [shape = 'u8[1024]{0}', space=vmem, size = 0x400, scoped, tag = 'input window, operand 0, single buffered']
    #allocation3 [shape = 's32[1]{0}', space=sflag, size = 0x4, scoped, tag = 'scoped memory for _lambda_.1']
    #allocation4 [shape = 'u8[4096]{0}', space=vmem, size = 0x1000, scoped, tag = 'input window, operand 1, single buffered']
    #allocation5 [shape = 's32[1]{0}', space=sflag, size = 0x4, scoped, tag = 'scoped memory for _lambda_.1']
    #allocation6 [shape = 'u8[512]{0}', space=vmem, size = 0x400, scoped, tag = 'input window, operand 2, single buffered']
    #allocation7 [shape = 'u8[512]{0}', space=vmem, size = 0x400, scoped, tag = 'input window, operand 6, single buffered']
    #allocation8 [shape = 's32[1]{0}', space=sflag, size = 0x4, scoped, tag = 'scoped memory for _lambda_.1']
    #allocation9 [shape = 'u8[32768]{0}', space=vmem, size = 0x8000, scoped, tag = 'input window, operand 9, single buffered']
    #allocation10 [shape = 'u8[2048]{0}', space=vmem, size = 0x800, scoped, tag = 'input window, operand 10, single buffered']
    #allocation11 [shape = 's32[1]{0}', space=sflag, size = 0x4, scoped, tag = 'scoped memory for _lambda_.1']
    #allocation12 [shape = 'u8[524288]{0}', space=vmem, size = 0x80000, scoped, tag = 'input window, operand 13, single buffered']
    #allocation13 [shape = 'u8[2048]{0}', space=vmem, size = 0x800, scoped, tag = 'input window, operand 14, single buffered']
    #allocation14 [shape = 's32[1]{0}', space=sflag, size = 0x4, scoped, tag = 'scoped memory for _lambda_.1']
    #allocation15 [shape = 'u8[524288]{0}', space=vmem, size = 0x80000, scoped, tag = 'input window, operand 15, single buffered']
    #allocation16 [shape = 'u8[393216]{0}', space=vmem, size = 0x60000, scoped, tag = 'input window, operand 17, single buffered']
    #allocation17 [shape = 's32[1]{0}', space=sflag, size = 0x4, scoped, tag = 'scoped memory for _lambda_.1']
    %24 = vsyncpa [#allocation3], 0
    %25 = vsyncpa [#allocation5], 0
    %26 = vsyncpa [#allocation8], 0
    %27 = vsyncpa [#allocation11], 0
    %28 = vsyncpa [#allocation14], 0
    %29 = vsyncpa [#allocation17], 0
    // Predicated region
    $region2: #{_lambda_.1} parent=1 // pred_check
      _
    $region3: #{_lambda_.1} parent=1 // pred_check_branch
      %31 = sbr.rel (0) target = $region5
    $region4: #{_lambda_.1} parent=1 // pred_region
      %33 = vsyncadd [#allocation3], 0
      %s35 = sshll.u32 %s0, 4
      %s36 = int_to_ptr.hbm [resolvable:$true] %s35
      %s37 = sshll.u32 [#allocation2], 4
      %s38 = int_to_ptr.vmem [resolvable:$true] %s37
      %40 = dma.hbm_to_vmem [thread:$0]  %s36, 32, %s38, [#allocation3]
    $region5: #{_lambda_.1} parent=1 // pred_fallthru
      _
    // Predicated region
    $region6: #{_lambda_.1} parent=1 // pred_check
      _
    $region7: #{_lambda_.1} parent=1 // pred_check_branch
      %42 = sbr.rel (0) target = $region9
    $region8: #{_lambda_.1} parent=1 // pred_region
      %44 = vsyncadd [#allocation5], 0
      %s45 = sshll.u32 %s1, 4
      %s46 = int_to_ptr.hbm [resolvable:$true] %s45
      %s47 = sshll.u32 [#allocation4], 4
      %s48 = int_to_ptr.vmem [resolvable:$true] %s47
      %53 = dma.hbm_to_vmem [thread:$0]  %s46, 128, %s48, [#allocation5], 64, 64, 4
    $region9: #{_lambda_.1} parent=1 // pred_fallthru
      _
    // Predicated region
    $region10: #{_lambda_.1} parent=1 // pred_check
      _
    $region11: #{_lambda_.1} parent=1 // pred_check_branch
      %55 = sbr.rel (0) target = $region13
    $region12: #{_lambda_.1} parent=1 // pred_region
      %57 = vsyncadd [#allocation5], 0
      %s59 = sshll.u32 %s2, 4
      %s60 = int_to_ptr.hbm [resolvable:$true] %s59
      %s61 = sshll.u32 [#allocation6], 4
      %s62 = int_to_ptr.vmem [resolvable:$true] %s61
      %64 = dma.hbm_to_vmem [thread:$0]  %s60, 16, %s62, [#allocation5]
    $region13: #{_lambda_.1} parent=1 // pred_fallthru
      _
    // Predicated region
    $region14: #{_lambda_.1} parent=1 // pred_check
      _
    $region15: #{_lambda_.1} parent=1 // pred_check_branch
      %66 = sbr.rel (0) target = $region17
    $region16: #{_lambda_.1} parent=1 // pred_region
      _
    $region17: #{_lambda_.1} parent=1 // pred_fallthru
      _
    // Predicated region
    $region18: #{_lambda_.1} parent=1 // pred_check
      _
    $region19: #{_lambda_.1} parent=1 // pred_check_branch
      %68 = sbr.rel (0) target = $region21
    $region20: #{_lambda_.1} parent=1 // pred_region
      _
    $region21: #{_lambda_.1} parent=1 // pred_fallthru
      _
    // Predicated region
    $region22: #{_lambda_.1} parent=1 // pred_check
      _
    $region23: #{_lambda_.1} parent=1 // pred_check_branch
      %70 = sbr.rel (0) target = $region25
    $region24: #{_lambda_.1} parent=1 // pred_region
      _
    $region25: #{_lambda_.1} parent=1 // pred_fallthru
      _
    // Predicated region
    $region26: #{_lambda_.1} parent=1 // pred_check
      _
    $region27: #{_lambda_.1} parent=1 // pred_check_branch
      %72 = sbr.rel (0) target = $region29
    $region28: #{_lambda_.1} parent=1 // pred_region
      %74 = vsyncadd [#allocation8], 0
      %s76 = sshll.u32 %s6, 4
      %s77 = int_to_ptr.hbm [resolvable:$true] %s76
      %s78 = sshll.u32 [#allocation7], 4
      %s79 = int_to_ptr.vmem [resolvable:$true] %s78
      %81 = dma.hbm_to_vmem [thread:$0]  %s77, 16, %s79, [#allocation8]
    $region29: #{_lambda_.1} parent=1 // pred_fallthru
      _
    // Predicated region
    $region30: #{_lambda_.1} parent=1 // pred_check
      _
    $region31: #{_lambda_.1} parent=1 // pred_check_branch
      %83 = sbr.rel (0) target = $region33
    $region32: #{_lambda_.1} parent=1 // pred_region
      _
    $region33: #{_lambda_.1} parent=1 // pred_fallthru
      _
    // Predicated region
    $region34: #{_lambda_.1} parent=1 // pred_check
      _
    $region35: #{_lambda_.1} parent=1 // pred_check_branch
      %85 = sbr.rel (0) target = $region37
    $region36: #{_lambda_.1} parent=1 // pred_region
      _
    $region37: #{_lambda_.1} parent=1 // pred_fallthru
      _
    // Predicated region
    $region38: #{_lambda_.1} parent=1 // pred_check
      _
    $region39: #{_lambda_.1} parent=1 // pred_check_branch
      %87 = sbr.rel (0) target = $region41
    $region40: #{_lambda_.1} parent=1 // pred_region
      %89 = vsyncadd [#allocation8], 0
      %s90 = sshll.u32 %s9, 4
      %s91 = int_to_ptr.hbm [resolvable:$true] %s90
      %s92 = sshll.u32 [#allocation9], 4
      %s93 = int_to_ptr.vmem [resolvable:$true] %s92
      %98 = dma.hbm_to_vmem [thread:$0]  %s91, 1024, %s93, [#allocation8], 256, 256, 16
    $region41: #{_lambda_.1} parent=1 // pred_fallthru
      _
    // Predicated region
    $region42: #{_lambda_.1} parent=1 // pred_check
      _
    $region43: #{_lambda_.1} parent=1 // pred_check_branch
      %100 = sbr.rel (0) target = $region45
    $region44: #{_lambda_.1} parent=1 // pred_region
      %102 = vsyncadd [#allocation11], 0
      %s104 = sshll.u32 %s10, 4
      %s105 = int_to_ptr.hbm [resolvable:$true] %s104
      %s106 = sshll.u32 [#allocation10], 4
      %s107 = int_to_ptr.vmem [resolvable:$true] %s106
      %109 = dma.hbm_to_vmem [thread:$0]  %s105, 64, %s107, [#allocation11]
    $region45: #{_lambda_.1} parent=1 // pred_fallthru
      _
    // Predicated region
    $region46: #{_lambda_.1} parent=1 // pred_check
      _
    $region47: #{_lambda_.1} parent=1 // pred_check_branch
      %111 = sbr.rel (0) target = $region49
    $region48: #{_lambda_.1} parent=1 // pred_region
      _
    $region49: #{_lambda_.1} parent=1 // pred_fallthru
      _
    // Predicated region
    $region50: #{_lambda_.1} parent=1 // pred_check
      _
    $region51: #{_lambda_.1} parent=1 // pred_check_branch
      %113 = sbr.rel (0) target = $region53
    $region52: #{_lambda_.1} parent=1 // pred_region
      _
    $region53: #{_lambda_.1} parent=1 // pred_fallthru
      _
    // Predicated region
    $region54: #{_lambda_.1} parent=1 // pred_check
      _
    $region55: #{_lambda_.1} parent=1 // pred_check_branch
      %115 = sbr.rel (0) target = $region57
    $region56: #{_lambda_.1} parent=1 // pred_region
      %117 = vsyncadd [#allocation11], 0
      %s118 = sshll.u32 %s13, 4
      %s119 = int_to_ptr.hbm [resolvable:$true] %s118
      %s120 = sshll.u32 [#allocation12], 4
      %s121 = int_to_ptr.vmem [resolvable:$true] %s120
      %126 = dma.hbm_to_vmem [thread:$0]  %s119, 16384, %s121, [#allocation11], 256, 256, 16
    $region57: #{_lambda_.1} parent=1 // pred_fallthru
      _
    // Predicated region
    $region58: #{_lambda_.1} parent=1 // pred_check
      _
    $region59: #{_lambda_.1} parent=1 // pred_check_branch
      %128 = sbr.rel (0) target = $region61
    $region60: #{_lambda_.1} parent=1 // pred_region
      %130 = vsyncadd [#allocation14], 0
      %s132 = sshll.u32 %s14, 4
      %s133 = int_to_ptr.hbm [resolvable:$true] %s132
      %s134 = sshll.u32 [#allocation13], 4
      %s135 = int_to_ptr.vmem [resolvable:$true] %s134
      %137 = dma.hbm_to_vmem [thread:$0]  %s133, 64, %s135, [#allocation14]
    $region61: #{_lambda_.1} parent=1 // pred_fallthru
      _
    // Predicated region
    $region62: #{_lambda_.1} parent=1 // pred_check
      _
    $region63: #{_lambda_.1} parent=1 // pred_check_branch
      %139 = sbr.rel (0) target = $region65
    $region64: #{_lambda_.1} parent=1 // pred_region
      %141 = vsyncadd [#allocation14], 0
      %s142 = sshll.u32 %s15, 4
      %s143 = int_to_ptr.hbm [resolvable:$true] %s142
      %s144 = sshll.u32 [#allocation15], 4
      %s145 = int_to_ptr.vmem [resolvable:$true] %s144
      %150 = dma.hbm_to_vmem [thread:$0]  %s143, 16384, %s145, [#allocation14], 256, 256, 16
    $region65: #{_lambda_.1} parent=1 // pred_fallthru
      _
    // Predicated region
    $region66: #{_lambda_.1} parent=1 // pred_check
      _
    $region67: #{_lambda_.1} parent=1 // pred_check_branch
      %152 = sbr.rel (0) target = $region69
    $region68: #{_lambda_.1} parent=1 // pred_region
      _
    $region69: #{_lambda_.1} parent=1 // pred_fallthru
      _
    // Predicated region
    $region70: #{_lambda_.1} parent=1 // pred_check
      _
    $region71: #{_lambda_.1} parent=1 // pred_check_branch
      %154 = sbr.rel (0) target = $region73
    $region72: #{_lambda_.1} parent=1 // pred_region
      %156 = vsyncadd [#allocation17], 0
      %s157 = sshll.u32 %s17, 4
      %s158 = int_to_ptr.hbm [resolvable:$true] %s157
      %s159 = sshll.u32 [#allocation16], 4
      %s160 = int_to_ptr.vmem [resolvable:$true] %s159
      %165 = dma.hbm_to_vmem [thread:$0]  %s158, 12288, %s160, [#allocation17], 192, 192, 12
    $region73: #{_lambda_.1} parent=1 // pred_fallthru
      _
    // Predicated region
    $region74: #{_lambda_.1} parent=1 // pred_check
      _
    $region75: #{_lambda_.1} parent=1 // pred_check_branch
      %167 = sbr.rel (0) target = $region77
    $region76: #{_lambda_.1} parent=1 // pred_region
      _
    $region77: #{_lambda_.1} parent=1 // pred_fallthru
      _
    // Predicated region
    $region78: #{_lambda_.1} parent=1 // pred_check
      _
    $region79: #{_lambda_.1} parent=1 // pred_check_branch
      %169 = sbr.rel (0) target = $region81
    $region80: #{_lambda_.1} parent=1 // pred_region
      %171 = dma.done [#allocation3], 32
    $region81: #{_lambda_.1} parent=1 // pred_fallthru
      _
    // Predicated region
    $region82: #{_lambda_.1} parent=1 // pred_check
      _
    $region83: #{_lambda_.1} parent=1 // pred_check_branch
      %173 = sbr.rel (0) target = $region85
    $region84: #{_lambda_.1} parent=1 // pred_region
      %175 = dma.done [#allocation5], 128
    $region85: #{_lambda_.1} parent=1 // pred_fallthru
      _
    // Predicated region
    $region86: #{_lambda_.1} parent=1 // pred_check
      _
    $region87: #{_lambda_.1} parent=1 // pred_check_branch
      %177 = sbr.rel (0) target = $region89
    $region88: #{_lambda_.1} parent=1 // pred_region
      %179 = dma.done [#allocation5], 16
    $region89: #{_lambda_.1} parent=1 // pred_fallthru
      _
    // Predicated region
    $region90: #{_lambda_.1} parent=1 // pred_check
      _
    $region91: #{_lambda_.1} parent=1 // pred_check_branch
      %181 = sbr.rel (0) target = $region93
    $region92: #{_lambda_.1} parent=1 // pred_region
      %183 = dma.done [#allocation8], 16
    $region93: #{_lambda_.1} parent=1 // pred_fallthru
      _
    // Predicated region
    $region94: #{_lambda_.1} parent=1 // pred_check
      _
    $region95: #{_lambda_.1} parent=1 // pred_check_branch
      %185 = sbr.rel (0) target = $region97
    $region96: #{_lambda_.1} parent=1 // pred_region
      %187 = dma.done [#allocation8], 1024
    $region97: #{_lambda_.1} parent=1 // pred_fallthru
      _
    // Predicated region
    $region98: #{_lambda_.1} parent=1 // pred_check
      _
    $region99: #{_lambda_.1} parent=1 // pred_check_branch
      %189 = sbr.rel (0) target = $region101
    $region100: #{_lambda_.1} parent=1 // pred_region
      %191 = dma.done [#allocation11], 64
    $region101: #{_lambda_.1} parent=1 // pred_fallthru
      _
    // Predicated region
    $region102: #{_lambda_.1} parent=1 // pred_check
      _
    $region103: #{_lambda_.1} parent=1 // pred_check_branch
      %193 = sbr.rel (0) target = $region105
    $region104: #{_lambda_.1} parent=1 // pred_region
      %195 = dma.done [#allocation11], 16384
    $region105: #{_lambda_.1} parent=1 // pred_fallthru
      _
    // Predicated region
    $region106: #{_lambda_.1} parent=1 // pred_check
      _
    $region107: #{_lambda_.1} parent=1 // pred_check_branch
      %197 = sbr.rel (0) target = $region109
    $region108: #{_lambda_.1} parent=1 // pred_region
      %199 = dma.done [#allocation14], 64
    $region109: #{_lambda_.1} parent=1 // pred_fallthru
      _
    // Predicated region
    $region110: #{_lambda_.1} parent=1 // pred_check
      _
    $region111: #{_lambda_.1} parent=1 // pred_check_branch
      %201 = sbr.rel (0) target = $region113
    $region112: #{_lambda_.1} parent=1 // pred_region
      %203 = dma.done [#allocation14], 16384
    $region113: #{_lambda_.1} parent=1 // pred_fallthru
      _
    // Predicated region
    $region114: #{_lambda_.1} parent=1 // pred_check
      _
    $region115: #{_lambda_.1} parent=1 // pred_check_branch
      %205 = sbr.rel (0) target = $region117
    $region116: #{_lambda_.1} parent=1 // pred_region
      %207 = dma.done [#allocation17], 12288
    $region117: #{_lambda_.1} parent=1 // pred_fallthru
      _
    %v209 = vld [vmem:[#allocation2] sm:$0x3]
    %v210 = vpack.c.bf16 %v209, %v209
    %v211 = vld [vmem:[#allocation4] sm:$0xf]
    %v212 = vld [vmem:[#allocation4 + $0x4] sm:$0xf]
    %v213 = vld [vmem:[#allocation6] sm:$0x1]
    %v215 = vperm.slane %v213, 0
    %v219 = vunpack.c.l.b16 %v211
    %v220 = vunpack.c.l.b16 %v212
    %v221 = vpack.c.b16 %v220, %v219
    %vm223 = vcmask 130048
    %v225 = vsel %vm223, %v210, 0
    %227 = vmatpush.bf16.msra.mxu0 0
    %228 = vmatpush.bf16.msra.mxu0 0
    %229 = vmatpush.bf16.msra.mxu0 0
    %230 = vmatpush.bf16.msra.mxu0 0
    %231 = vmatpush.bf16.msra.mxu0 0
    %232 = vmatpush.bf16.msra.mxu0 0
    %233 = vmatpush.bf16.msra.mxu0 0
    %234 = vmatpush.bf16.msra.mxu0 %v221
    %235 = vmatmul.bf16.gmra.mxu0 %v225
    %v236 = vpop.f32.mrf.mxu0
    %v237 = vadd.f32 %v215, %v236
    %v238 = vpop.f32.mrf.mxu0
    %239 = vdwg.mxu0
    %vm240 = vcmask 254976
    %v241 = vsel %vm240, %v237, 0.0
    %242 = vadd.xlane.f32.xlu0 %v241
    %v243 = vpop.xlane.xlu0 %242
    %v244 = vrcp.pop 32.0
    %v245 = vmul.f32 32.0, %v244
    %v246 = vsub.f32 1.0, %v245
    %v247 = vmul.f32 %v244, %v246
    %v248 = vadd.f32 %v244, %v247
    %vm249 = vweird.f32 %v244
    %v250 = vsel %vm249, %v244, %v248
    %v251 = vmul.f32 %v243, %v250
    %v252 = vsub.f32 %v237, %v251
    %v253 = vmul.f32 %v252, %v252
    %v254 = vsel %vm240, %v253, 0.0
    %255 = vadd.xlane.f32.xlu0 %v254
    %v256 = vpop.xlane.xlu0 %255
    %v257 = vmul.f32 %v256, %v250
    %v258 = vadd.f32 %v257, 1e-05
    %v259 = vrsqrt.pop %v258
    %v260 = vmul.f32 %v259, %v258
    %v261 = vmul.f32 %v260, %v259
    %v262 = vmul.f32 0.5, %v261
    %v263 = vsub.f32 1.5, %v262
    %v264 = vmul.f32 %v259, %v263
    %vm265 = vweird.f32 %v258
    %vm266 = vweird.f32 %v259
    %vm267 = vmor %vm265, %vm266
    %v268 = vsel %vm267, %v259, %v264
    %v269 = vmul.f32 %v252, %v268
    %v270 = vld [vmem:[%s3] sm:$0x1]
    %v272 = vperm.slane %v270, 0
    %v274 = vmul.f32 %v269, %v272
    %v275 = vld [vmem:[%s4] sm:$0x1]
    %v277 = vperm.slane %v275, 0
    %v279 = vadd.f32 %v274, %v277
    %v280 = vmax.f32 %v279, 0.0
    %v281 = vpack.c.bf16 %v280, %v280
    %v282 = vld [vmem:[%s5] sm:$0xf]
    %v283 = vld [vmem:[%s5 + $0x4] sm:$0xf]
    %v284 = vld [vmem:[%s5 + $0x8] sm:$0xf]
    %v285 = vld [vmem:[%s5 + $0xc] sm:$0xf]
    %v286 = vld [vmem:[#allocation7] sm:$0x1]
    %v288 = vperm.slane %v286, 0
    %v294 = vunpack.c.l.b16 %v282
    %v295 = vunpack.c.l.b16 %v283
    %v296 = vunpack.c.l.b16 %v284
    %v297 = vunpack.c.l.b16 %v285
    %v298 = vpack.c.b16 %v295, %v294
    %v299 = vpack.c.b16 %v297, %v296
    %vm302 = vcmask 261120
    %v304 = vsel %vm302, %v281, 0
    %306 = vmatpush.bf16.msra.mxu0 0
    %307 = vmatpush.bf16.msra.mxu0 0
    %308 = vmatpush.bf16.msra.mxu0 0
    %309 = vmatpush.bf16.msra.mxu0 0
    %310 = vmatpush.bf16.msra.mxu0 0
    %311 = vmatpush.bf16.msra.mxu0 0
    %312 = vmatpush.bf16.msra.mxu0 %v299
    %313 = vmatpush.bf16.msra.mxu0 %v298
    %314 = vmatmul.bf16.gmra.mxu0 %v304
    %v315 = vpop.f32.mrf.mxu0
    %v316 = vadd.f32 %v288, %v315
    %v317 = vpop.f32.mrf.mxu0
    %318 = vdwg.mxu0
    %v319 = vsel %vm240, %v316, 0.0
    %320 = vadd.xlane.f32.xlu0 %v319
    %v321 = vpop.xlane.xlu0 %320
    %v322 = vmul.f32 %v321, %v250
    %v323 = vsub.f32 %v316, %v322
    %v324 = vmul.f32 %v323, %v323
    %v325 = vsel %vm240, %v324, 0.0
    %326 = vadd.xlane.f32.xlu0 %v325
    %v327 = vpop.xlane.xlu0 %326
    %v328 = vmul.f32 %v327, %v250
    %v329 = vadd.f32 %v328, 1e-05
    %v330 = vrsqrt.pop %v329
    %v331 = vmul.f32 %v330, %v329
    %v332 = vmul.f32 %v331, %v330
    %v333 = vmul.f32 0.5, %v332
    %v334 = vsub.f32 1.5, %v333
    %v335 = vmul.f32 %v330, %v334
    %vm336 = vweird.f32 %v329
    %vm337 = vweird.f32 %v330
    %vm338 = vmor %vm336, %vm337
    %v339 = vsel %vm338, %v330, %v335
    %v340 = vmul.f32 %v323, %v339
    %v341 = vld [vmem:[%s7] sm:$0x1]
    %v343 = vperm.slane %v341, 0
    %v345 = vmul.f32 %v340, %v343
    %v346 = vld [vmem:[%s8] sm:$0x1]
    %v348 = vperm.slane %v346, 0
    %v350 = vadd.f32 %v345, %v348
    %v351 = vmax.f32 %v350, 0.0
    %v352 = vpack.c.bf16 %v351, %v351
    %v353 = vld [vmem:[#allocation9] sm:$0xff]
    %v354 = vld [vmem:[#allocation9 + $0x8] sm:$0xff]
    %v355 = vld [vmem:[#allocation9 + $0x10] sm:$0xff]
    %v356 = vld [vmem:[#allocation9 + $0x18] sm:$0xff]
    %v357 = vld [vmem:[#allocation9 + $0x20] sm:$0xff]
    %v358 = vld [vmem:[#allocation9 + $0x28] sm:$0xff]
    %v359 = vld [vmem:[#allocation9 + $0x30] sm:$0xff]
    %v360 = vld [vmem:[#allocation9 + $0x38] sm:$0xff]
    %v361 = vld [vmem:[#allocation10] sm:$0xf]
    %v363 = vperm.slane %v361, 0
    %v364 = vperm.slane %v361, 1
    %v365 = vperm.slane %v361, 2
    %v366 = vperm.slane %v361, 3
    %v379 = vunpack.c.l.b16 %v353
    %v380 = vunpack.c.h.b16 %v353
    %v381 = vunpack.c.l.b16 %v354
    %v382 = vunpack.c.h.b16 %v354
    %v383 = vunpack.c.l.b16 %v355
    %v384 = vunpack.c.h.b16 %v355
    %v385 = vunpack.c.l.b16 %v356
    %v386 = vunpack.c.h.b16 %v356
    %v387 = vunpack.c.l.b16 %v357
    %v388 = vunpack.c.h.b16 %v357
    %v389 = vunpack.c.l.b16 %v358
    %v390 = vunpack.c.h.b16 %v358
    %v391 = vunpack.c.l.b16 %v359
    %v392 = vunpack.c.h.b16 %v359
    %v393 = vunpack.c.l.b16 %v360
    %v394 = vunpack.c.h.b16 %v360
    %v395 = vpack.c.b16 %v383, %v379
    %v396 = vpack.c.b16 %v384, %v380
    %v397 = vpack.c.b16 %v385, %v381
    %v398 = vpack.c.b16 %v386, %v382
    %v399 = vpack.c.b16 %v391, %v387
    %v400 = vpack.c.b16 %v392, %v388
    %v401 = vpack.c.b16 %v393, %v389
    %v402 = vpack.c.b16 %v394, %v390
    %v412 = vsel %vm302, %v352, 0
    %414 = vmatpush.bf16.msra.mxu0 0
    %415 = vmatpush.bf16.msra.mxu0 0
    %416 = vmatpush.bf16.msra.mxu0 0
    %417 = vmatpush.bf16.msra.mxu0 0
    %418 = vmatpush.bf16.msra.mxu0 0
    %419 = vmatpush.bf16.msra.mxu0 0
    %420 = vmatpush.bf16.msra.mxu0 %v399
    %421 = vmatpush.bf16.msra.mxu0 %v395
    %422 = vmatmul.bf16.gmra.mxu0 %v412
    %v423 = vpop.f32.mrf.mxu0
    %v424 = vadd.f32 %v363, %v423
    %v425 = vpop.f32.mrf.mxu0
    %426 = vdwg.mxu0
    %427 = vmatpush.bf16.msra.mxu0 0
    %428 = vmatpush.bf16.msra.mxu0 0
    %429 = vmatpush.bf16.msra.mxu0 0
    %430 = vmatpush.bf16.msra.mxu0 0
    %431 = vmatpush.bf16.msra.mxu0 0
    %432 = vmatpush.bf16.msra.mxu0 0
    %433 = vmatpush.bf16.msra.mxu0 %v400
    %434 = vmatpush.bf16.msra.mxu0 %v396
    %435 = vmatmul.bf16.gmra.mxu0 %v412
    %v436 = vpop.f32.mrf.mxu0
    %v437 = vadd.f32 %v364, %v436
    %v438 = vpop.f32.mrf.mxu0
    %439 = vdwg.mxu0
    %440 = vmatpush.bf16.msra.mxu0 0
    %441 = vmatpush.bf16.msra.mxu0 0
    %442 = vmatpush.bf16.msra.mxu0 0
    %443 = vmatpush.bf16.msra.mxu0 0
    %444 = vmatpush.bf16.msra.mxu0 0
    %445 = vmatpush.bf16.msra.mxu0 0
    %446 = vmatpush.bf16.msra.mxu0 %v401
    %447 = vmatpush.bf16.msra.mxu0 %v397
    %448 = vmatmul.bf16.gmra.mxu0 %v412
    %v449 = vpop.f32.mrf.mxu0
    %v450 = vadd.f32 %v365, %v449
    %v451 = vpop.f32.mrf.mxu0
    %452 = vdwg.mxu0
    %453 = vmatpush.bf16.msra.mxu0 0
    %454 = vmatpush.bf16.msra.mxu0 0
    %455 = vmatpush.bf16.msra.mxu0 0
    %456 = vmatpush.bf16.msra.mxu0 0
    %457 = vmatpush.bf16.msra.mxu0 0
    %458 = vmatpush.bf16.msra.mxu0 0
    %459 = vmatpush.bf16.msra.mxu0 %v402
    %460 = vmatpush.bf16.msra.mxu0 %v398
    %461 = vmatmul.bf16.gmra.mxu0 %v412
    %v462 = vpop.f32.mrf.mxu0
    %v463 = vadd.f32 %v366, %v462
    %v464 = vpop.f32.mrf.mxu0
    %465 = vdwg.mxu0
    %vm466 = vcmask 1041408
    %v467 = vsel %vm466, %v424, 0.0
    %v468 = vsel %vm466, %v437, 0.0
    %v469 = vadd.f32 %v467, %v468
    %v470 = vsel %vm466, %v450, 0.0
    %v471 = vadd.f32 %v469, %v470
    %v472 = vsel %vm466, %v463, 0.0
    %v473 = vadd.f32 %v471, %v472
    %474 = vadd.xlane.f32.xlu0 %v473
    %v475 = vpop.xlane.xlu0 %474
    %v476 = vrcp.pop 512.0
    %v477 = vmul.f32 512.0, %v476
    %v478 = vsub.f32 1.0, %v477
    %v479 = vmul.f32 %v476, %v478
    %v480 = vadd.f32 %v476, %v479
    %vm481 = vweird.f32 %v476
    %v482 = vsel %vm481, %v476, %v480
    %v483 = vmul.f32 %v475, %v482
    %v484 = vsub.f32 %v424, %v483
    %v485 = vsub.f32 %v437, %v483
    %v486 = vsub.f32 %v450, %v483
    %v487 = vsub.f32 %v463, %v483
    %v488 = vmul.f32 %v484, %v484
    %v489 = vmul.f32 %v485, %v485
    %v490 = vmul.f32 %v486, %v486
    %v491 = vmul.f32 %v487, %v487
    %v492 = vsel %vm466, %v488, 0.0
    %v493 = vsel %vm466, %v489, 0.0
    %v494 = vadd.f32 %v492, %v493
    %v495 = vsel %vm466, %v490, 0.0
    %v496 = vadd.f32 %v494, %v495
    %v497 = vsel %vm466, %v491, 0.0
    %v498 = vadd.f32 %v496, %v497
    %499 = vadd.xlane.f32.xlu0 %v498
    %v500 = vpop.xlane.xlu0 %499
    %v501 = vmul.f32 %v500, %v482
    %v502 = vadd.f32 %v501, 1e-05
    %v503 = vrsqrt.pop %v502
    %v504 = vmul.f32 %v503, %v502
    %v505 = vmul.f32 %v504, %v503
    %v506 = vmul.f32 0.5, %v505
    %v507 = vsub.f32 1.5, %v506
    %v508 = vmul.f32 %v503, %v507
    %vm509 = vweird.f32 %v502
    %vm510 = vweird.f32 %v503
    %vm511 = vmor %vm509, %vm510
    %v512 = vsel %vm511, %v503, %v508
    %v513 = vmul.f32 %v484, %v512
    %v514 = vmul.f32 %v485, %v512
    %v515 = vmul.f32 %v486, %v512
    %v516 = vmul.f32 %v487, %v512
    %v517 = vld [vmem:[%s11] sm:$0xf]
    %v519 = vperm.slane %v517, 0
    %v520 = vperm.slane %v517, 1
    %v521 = vperm.slane %v517, 2
    %v522 = vperm.slane %v517, 3
    %v527 = vmul.f32 %v513, %v519
    %v528 = vmul.f32 %v514, %v520
    %v529 = vmul.f32 %v515, %v521
    %v530 = vmul.f32 %v516, %v522
    %v531 = vld [vmem:[%s12] sm:$0xf]
    %v533 = vperm.slane %v531, 0
    %v534 = vperm.slane %v531, 1
    %v535 = vperm.slane %v531, 2
    %v536 = vperm.slane %v531, 3
    %v541 = vadd.f32 %v527, %v533
    %v542 = vadd.f32 %v528, %v534
    %v543 = vadd.f32 %v529, %v535
    %v544 = vadd.f32 %v530, %v536
    %v545 = vmax.f32 %v541, 0.0
    %v546 = vmax.f32 %v542, 0.0
    %v547 = vmax.f32 %v543, 0.0
    %v548 = vmax.f32 %v544, 0.0
    %v549 = vpack.c.bf16 %v545, %v545
    %v550 = vpack.c.bf16 %v546, %v546
    %v551 = vpack.c.bf16 %v547, %v547
    %v552 = vpack.c.bf16 %v548, %v548
    %v553 = vld [vmem:[#allocation12] sm:$0xff]
    %v554 = vld [vmem:[#allocation12 + $0x8] sm:$0xff]
    %v555 = vld [vmem:[#allocation12 + $0x10] sm:$0xff]
    %v556 = vld [vmem:[#allocation12 + $0x18] sm:$0xff]
    %v557 = vld [vmem:[#allocation12 + $0x20] sm:$0xff]
    %v558 = vld [vmem:[#allocation12 + $0x28] sm:$0xff]
    %v559 = vld [vmem:[#allocation12 + $0x30] sm:$0xff]
    %v560 = vld [vmem:[#allocation12 + $0x38] sm:$0xff]
    %v561 = vld [vmem:[#allocation12 + $0x40] sm:$0xff]
    %v562 = vld [vmem:[#allocation12 + $0x48] sm:$0xff]
    %v563 = vld [vmem:[#allocation12 + $0x50] sm:$0xff]
    %v564 = vld [vmem:[#allocation12 + $0x58] sm:$0xff]
    %v565 = vld [vmem:[#allocation12 + $0x60] sm:$0xff]
    %v566 = vld [vmem:[#allocation12 + $0x68] sm:$0xff]
    %v567 = vld [vmem:[#allocation12 + $0x70] sm:$0xff]
    %v568 = vld [vmem:[#allocation12 + $0x78] sm:$0xff]
    %v569 = vld [vmem:[#allocation12 + $0x80] sm:$0xff]
    %v570 = vld [vmem:[#allocation12 + $0x88] sm:$0xff]
    %v571 = vld [vmem:[#allocation12 + $0x90] sm:$0xff]
    %v572 = vld [vmem:[#allocation12 + $0x98] sm:$0xff]
    %v573 = vld [vmem:[#allocation12 + $0xa0] sm:$0xff]
    %v574 = vld [vmem:[#allocation12 + $0xa8] sm:$0xff]
    %v575 = vld [vmem:[#allocation12 + $0xb0] sm:$0xff]
    %v576 = vld [vmem:[#allocation12 + $0xb8] sm:$0xff]
    %v577 = vld [vmem:[#allocation12 + $0xc0] sm:$0xff]
    %v578 = vld [vmem:[#allocation12 + $0xc8] sm:$0xff]
    %v579 = vld [vmem:[#allocation12 + $0xd0] sm:$0xff]
    %v580 = vld [vmem:[#allocation12 + $0xd8] sm:$0xff]
    %v581 = vld [vmem:[#allocation12 + $0xe0] sm:$0xff]
    %v582 = vld [vmem:[#allocation12 + $0xe8] sm:$0xff]
    %v583 = vld [vmem:[#allocation12 + $0xf0] sm:$0xff]
    %v584 = vld [vmem:[#allocation12 + $0xf8] sm:$0xff]
    %v585 = vld [vmem:[#allocation12 + $0x100] sm:$0xff]
    %v586 = vld [vmem:[#allocation12 + $0x108] sm:$0xff]
    %v587 = vld [vmem:[#allocation12 + $0x110] sm:$0xff]
    %v588 = vld [vmem:[#allocation12 + $0x118] sm:$0xff]
    %v589 = vld [vmem:[#allocation12 + $0x120] sm:$0xff]
    %v590 = vld [vmem:[#allocation12 + $0x128] sm:$0xff]
    %v591 = vld [vmem:[#allocation12 + $0x130] sm:$0xff]
    %v592 = vld [vmem:[#allocation12 + $0x138] sm:$0xff]
    %v593 = vld [vmem:[#allocation12 + $0x140] sm:$0xff]
    %v594 = vld [vmem:[#allocation12 + $0x148] sm:$0xff]
    %v595 = vld [vmem:[#allocation12 + $0x150] sm:$0xff]
    %v596 = vld [vmem:[#allocation12 + $0x158] sm:$0xff]
    %v597 = vld [vmem:[#allocation12 + $0x160] sm:$0xff]
    %v598 = vld [vmem:[#allocation12 + $0x168] sm:$0xff]
    %v599 = vld [vmem:[#allocation12 + $0x170] sm:$0xff]
    %v600 = vld [vmem:[#allocation12 + $0x178] sm:$0xff]
    %v601 = vld [vmem:[#allocation12 + $0x180] sm:$0xff]
    %v602 = vld [vmem:[#allocation12 + $0x188] sm:$0xff]
    %v603 = vld [vmem:[#allocation12 + $0x190] sm:$0xff]
    %v604 = vld [vmem:[#allocation12 + $0x198] sm:$0xff]
    %v605 = vld [vmem:[#allocation12 + $0x1a0] sm:$0xff]
    %v606 = vld [vmem:[#allocation12 + $0x1a8] sm:$0xff]
    %v607 = vld [vmem:[#allocation12 + $0x1b0] sm:$0xff]
    %v608 = vld [vmem:[#allocation12 + $0x1b8] sm:$0xff]
    %v609 = vld [vmem:[#allocation12 + $0x1c0] sm:$0xff]
    %v610 = vld [vmem:[#allocation12 + $0x1c8] sm:$0xff]
    %v611 = vld [vmem:[#allocation12 + $0x1d0] sm:$0xff]
    %v612 = vld [vmem:[#allocation12 + $0x1d8] sm:$0xff]
    %v613 = vld [vmem:[#allocation12 + $0x1e0] sm:$0xff]
    %v614 = vld [vmem:[#allocation12 + $0x1e8] sm:$0xff]
    %v615 = vld [vmem:[#allocation12 + $0x1f0] sm:$0xff]
    %v616 = vld [vmem:[#allocation12 + $0x1f8] sm:$0xff]
    %v617 = vld [vmem:[#allocation12 + $0x200] sm:$0xff]
    %v618 = vld [vmem:[#allocation12 + $0x208] sm:$0xff]
    %v619 = vld [vmem:[#allocation12 + $0x210] sm:$0xff]
    %v620 = vld [vmem:[#allocation12 + $0x218] sm:$0xff]
    %v621 = vld [vmem:[#allocation12 + $0x220] sm:$0xff]
    %v622 = vld [vmem:[#allocation12 + $0x228] sm:$0xff]
    %v623 = vld [vmem:[#allocation12 + $0x230] sm:$0xff]
    %v624 = vld [vmem:[#allocation12 + $0x238] sm:$0xff]
    %v625 = vld [vmem:[#allocation12 + $0x240] sm:$0xff]
    %v626 = vld [vmem:[#allocation12 + $0x248] sm:$0xff]
    %v627 = vld [vmem:[#allocation12 + $0x250] sm:$0xff]
    %v628 = vld [vmem:[#allocation12 + $0x258] sm:$0xff]
    %v629 = vld [vmem:[#allocation12 + $0x260] sm:$0xff]
    %v630 = vld [vmem:[#allocation12 + $0x268] sm:$0xff]
    %v631 = vld [vmem:[#allocation12 + $0x270] sm:$0xff]
    %v632 = vld [vmem:[#allocation12 + $0x278] sm:$0xff]
    %v633 = vld [vmem:[#allocation12 + $0x280] sm:$0xff]
    %v634 = vld [vmem:[#allocation12 + $0x288] sm:$0xff]
    %v635 = vld [vmem:[#allocation12 + $0x290] sm:$0xff]
    %v636 = vld [vmem:[#allocation12 + $0x298] sm:$0xff]
    %v637 = vld [vmem:[#allocation12 + $0x2a0] sm:$0xff]
    %v638 = vld [vmem:[#allocation12 + $0x2a8] sm:$0xff]
    %v639 = vld [vmem:[#allocation12 + $0x2b0] sm:$0xff]
    %v640 = vld [vmem:[#allocation12 + $0x2b8] sm:$0xff]
    %v641 = vld [vmem:[#allocation12 + $0x2c0] sm:$0xff]
    %v642 = vld [vmem:[#allocation12 + $0x2c8] sm:$0xff]
    %v643 = vld [vmem:[#allocation12 + $0x2d0] sm:$0xff]
    %v644 = vld [vmem:[#allocation12 + $0x2d8] sm:$0xff]
    %v645 = vld [vmem:[#allocation12 + $0x2e0] sm:$0xff]
    %v646 = vld [vmem:[#allocation12 + $0x2e8] sm:$0xff]
    %v647 = vld [vmem:[#allocation12 + $0x2f0] sm:$0xff]
    %v648 = vld [vmem:[#allocation12 + $0x2f8] sm:$0xff]
    %v649 = vld [vmem:[#allocation12 + $0x300] sm:$0xff]
    %v650 = vld [vmem:[#allocation12 + $0x308] sm:$0xff]
    %v651 = vld [vmem:[#allocation12 + $0x310] sm:$0xff]
    %v652 = vld [vmem:[#allocation12 + $0x318] sm:$0xff]
    %v653 = vld [vmem:[#allocation12 + $0x320] sm:$0xff]
    %v654 = vld [vmem:[#allocation12 + $0x328] sm:$0xff]
    %v655 = vld [vmem:[#allocation12 + $0x330] sm:$0xff]
    %v656 = vld [vmem:[#allocation12 + $0x338] sm:$0xff]
    %v657 = vld [vmem:[#allocation12 + $0x340] sm:$0xff]
    %v658 = vld [vmem:[#allocation12 + $0x348] sm:$0xff]
    %v659 = vld [vmem:[#allocation12 + $0x350] sm:$0xff]
    %v660 = vld [vmem:[#allocation12 + $0x358] sm:$0xff]
    %v661 = vld [vmem:[#allocation12 + $0x360] sm:$0xff]
    %v662 = vld [vmem:[#allocation12 + $0x368] sm:$0xff]
    %v663 = vld [vmem:[#allocation12 + $0x370] sm:$0xff]
    %v664 = vld [vmem:[#allocation12 + $0x378] sm:$0xff]
    %v665 = vld [vmem:[#allocation12 + $0x380] sm:$0xff]
    %v666 = vld [vmem:[#allocation12 + $0x388] sm:$0xff]
    %v667 = vld [vmem:[#allocation12 + $0x390] sm:$0xff]
    %v668 = vld [vmem:[#allocation12 + $0x398] sm:$0xff]
    %v669 = vld [vmem:[#allocation12 + $0x3a0] sm:$0xff]
    %v670 = vld [vmem:[#allocation12 + $0x3a8] sm:$0xff]
    %v671 = vld [vmem:[#allocation12 + $0x3b0] sm:$0xff]
    %v672 = vld [vmem:[#allocation12 + $0x3b8] sm:$0xff]
    %v673 = vld [vmem:[#allocation12 + $0x3c0] sm:$0xff]
    %v674 = vld [vmem:[#allocation12 + $0x3c8] sm:$0xff]
    %v675 = vld [vmem:[#allocation12 + $0x3d0] sm:$0xff]
    %v676 = vld [vmem:[#allocation12 + $0x3d8] sm:$0xff]
    %v677 = vld [vmem:[#allocation12 + $0x3e0] sm:$0xff]
    %v678 = vld [vmem:[#allocation12 + $0x3e8] sm:$0xff]
    %v679 = vld [vmem:[#allocation12 + $0x3f0] sm:$0xff]
    %v680 = vld [vmem:[#allocation12 + $0x3f8] sm:$0xff]
    %v681 = vld [vmem:[#allocation13] sm:$0xf]
    %v683 = vperm.slane %v681, 0
    %v684 = vperm.slane %v681, 1
    %v685 = vperm.slane %v681, 2
    %v686 = vperm.slane %v681, 3
    %v819 = vunpack.c.l.b16 %v553
    %v820 = vunpack.c.h.b16 %v553
    %v821 = vunpack.c.l.b16 %v554
    %v822 = vunpack.c.h.b16 %v554
    %v823 = vunpack.c.l.b16 %v555
    %v824 = vunpack.c.h.b16 %v555
    %v825 = vunpack.c.l.b16 %v556
    %v826 = vunpack.c.h.b16 %v556
    %v827 = vunpack.c.l.b16 %v557
    %v828 = vunpack.c.h.b16 %v557
    %v829 = vunpack.c.l.b16 %v558
    %v830 = vunpack.c.h.b16 %v558
    %v831 = vunpack.c.l.b16 %v559
    %v832 = vunpack.c.h.b16 %v559
    %v833 = vunpack.c.l.b16 %v560
    %v834 = vunpack.c.h.b16 %v560
    %v835 = vunpack.c.l.b16 %v561
    %v836 = vunpack.c.h.b16 %v561
    %v837 = vunpack.c.l.b16 %v562
    %v838 = vunpack.c.h.b16 %v562
    %v839 = vunpack.c.l.b16 %v563
    %v840 = vunpack.c.h.b16 %v563
    %v841 = vunpack.c.l.b16 %v564
    %v842 = vunpack.c.h.b16 %v564
    %v843 = vunpack.c.l.b16 %v565
    %v844 = vunpack.c.h.b16 %v565
    %v845 = vunpack.c.l.b16 %v566
    %v846 = vunpack.c.h.b16 %v566
    %v847 = vunpack.c.l.b16 %v567
    %v848 = vunpack.c.h.b16 %v567
    %v849 = vunpack.c.l.b16 %v568
    %v850 = vunpack.c.h.b16 %v568
    %v851 = vunpack.c.l.b16 %v569
    %v852 = vunpack.c.h.b16 %v569
    %v853 = vunpack.c.l.b16 %v570
    %v854 = vunpack.c.h.b16 %v570
    %v855 = vunpack.c.l.b16 %v571
    %v856 = vunpack.c.h.b16 %v571
    %v857 = vunpack.c.l.b16 %v572
    %v858 = vunpack.c.h.b16 %v572
    %v859 = vunpack.c.l.b16 %v573
    %v860 = vunpack.c.h.b16 %v573
    %v861 = vunpack.c.l.b16 %v574
    %v862 = vunpack.c.h.b16 %v574
    %v863 = vunpack.c.l.b16 %v575
    %v864 = vunpack.c.h.b16 %v575
    %v865 = vunpack.c.l.b16 %v576
    %v866 = vunpack.c.h.b16 %v576
    %v867 = vunpack.c.l.b16 %v577
    %v868 = vunpack.c.h.b16 %v577
    %v869 = vunpack.c.l.b16 %v578
    %v870 = vunpack.c.h.b16 %v578
    %v871 = vunpack.c.l.b16 %v579
    %v872 = vunpack.c.h.b16 %v579
    %v873 = vunpack.c.l.b16 %v580
    %v874 = vunpack.c.h.b16 %v580
    %v875 = vunpack.c.l.b16 %v581
    %v876 = vunpack.c.h.b16 %v581
    %v877 = vunpack.c.l.b16 %v582
    %v878 = vunpack.c.h.b16 %v582
    %v879 = vunpack.c.l.b16 %v583
    %v880 = vunpack.c.h.b16 %v583
    %v881 = vunpack.c.l.b16 %v584
    %v882 = vunpack.c.h.b16 %v584
    %v883 = vunpack.c.l.b16 %v585
    %v884 = vunpack.c.h.b16 %v585
    %v885 = vunpack.c.l.b16 %v586
    %v886 = vunpack.c.h.b16 %v586
    %v887 = vunpack.c.l.b16 %v587
    %v888 = vunpack.c.h.b16 %v587
    %v889 = vunpack.c.l.b16 %v588
    %v890 = vunpack.c.h.b16 %v588
    %v891 = vunpack.c.l.b16 %v589
    %v892 = vunpack.c.h.b16 %v589
    %v893 = vunpack.c.l.b16 %v590
    %v894 = vunpack.c.h.b16 %v590
    %v895 = vunpack.c.l.b16 %v591
    %v896 = vunpack.c.h.b16 %v591
    %v897 = vunpack.c.l.b16 %v592
    %v898 = vunpack.c.h.b16 %v592
    %v899 = vunpack.c.l.b16 %v593
    %v900 = vunpack.c.h.b16 %v593
    %v901 = vunpack.c.l.b16 %v594
    %v902 = vunpack.c.h.b16 %v594
    %v903 = vunpack.c.l.b16 %v595
    %v904 = vunpack.c.h.b16 %v595
    %v905 = vunpack.c.l.b16 %v596
    %v906 = vunpack.c.h.b16 %v596
    %v907 = vunpack.c.l.b16 %v597
    %v908 = vunpack.c.h.b16 %v597
    %v909 = vunpack.c.l.b16 %v598
    %v910 = vunpack.c.h.b16 %v598
    %v911 = vunpack.c.l.b16 %v599
    %v912 = vunpack.c.h.b16 %v599
    %v913 = vunpack.c.l.b16 %v600
    %v914 = vunpack.c.h.b16 %v600
    %v915 = vunpack.c.l.b16 %v601
    %v916 = vunpack.c.h.b16 %v601
    %v917 = vunpack.c.l.b16 %v602
    %v918 = vunpack.c.h.b16 %v602
    %v919 = vunpack.c.l.b16 %v603
    %v920 = vunpack.c.h.b16 %v603
    %v921 = vunpack.c.l.b16 %v604
    %v922 = vunpack.c.h.b16 %v604
    %v923 = vunpack.c.l.b16 %v605
    %v924 = vunpack.c.h.b16 %v605
    %v925 = vunpack.c.l.b16 %v606
    %v926 = vunpack.c.h.b16 %v606
    %v927 = vunpack.c.l.b16 %v607
    %v928 = vunpack.c.h.b16 %v607
    %v929 = vunpack.c.l.b16 %v608
    %v930 = vunpack.c.h.b16 %v608
    %v931 = vunpack.c.l.b16 %v609
    %v932 = vunpack.c.h.b16 %v609
    %v933 = vunpack.c.l.b16 %v610
    %v934 = vunpack.c.h.b16 %v610
    %v935 = vunpack.c.l.b16 %v611
    %v936 = vunpack.c.h.b16 %v611
    %v937 = vunpack.c.l.b16 %v612
    %v938 = vunpack.c.h.b16 %v612
    %v939 = vunpack.c.l.b16 %v613
    %v940 = vunpack.c.h.b16 %v613
    %v941 = vunpack.c.l.b16 %v614
    %v942 = vunpack.c.h.b16 %v614
    %v943 = vunpack.c.l.b16 %v615
    %v944 = vunpack.c.h.b16 %v615
    %v945 = vunpack.c.l.b16 %v616
    %v946 = vunpack.c.h.b16 %v616
    %v947 = vunpack.c.l.b16 %v617
    %v948 = vunpack.c.h.b16 %v617
    %v949 = vunpack.c.l.b16 %v618
    %v950 = vunpack.c.h.b16 %v618
    %v951 = vunpack.c.l.b16 %v619
    %v952 = vunpack.c.h.b16 %v619
    %v953 = vunpack.c.l.b16 %v620
    %v954 = vunpack.c.h.b16 %v620
    %v955 = vunpack.c.l.b16 %v621
    %v956 = vunpack.c.h.b16 %v621
    %v957 = vunpack.c.l.b16 %v622
    %v958 = vunpack.c.h.b16 %v622
    %v959 = vunpack.c.l.b16 %v623
    %v960 = vunpack.c.h.b16 %v623
    %v961 = vunpack.c.l.b16 %v624
    %v962 = vunpack.c.h.b16 %v624
    %v963 = vunpack.c.l.b16 %v625
    %v964 = vunpack.c.h.b16 %v625
    %v965 = vunpack.c.l.b16 %v626
    %v966 = vunpack.c.h.b16 %v626
    %v967 = vunpack.c.l.b16 %v627
    %v968 = vunpack.c.h.b16 %v627
    %v969 = vunpack.c.l.b16 %v628
    %v970 = vunpack.c.h.b16 %v628
    %v971 = vunpack.c.l.b16 %v629
    %v972 = vunpack.c.h.b16 %v629
    %v973 = vunpack.c.l.b16 %v630
    %v974 = vunpack.c.h.b16 %v630
    %v975 = vunpack.c.l.b16 %v631
    %v976 = vunpack.c.h.b16 %v631
    %v977 = vunpack.c.l.b16 %v632
    %v978 = vunpack.c.h.b16 %v632
    %v979 = vunpack.c.l.b16 %v633
    %v980 = vunpack.c.h.b16 %v633
    %v981 = vunpack.c.l.b16 %v634
    %v982 = vunpack.c.h.b16 %v634
    %v983 = vunpack.c.l.b16 %v635
    %v984 = vunpack.c.h.b16 %v635
    %v985 = vunpack.c.l.b16 %v636
    %v986 = vunpack.c.h.b16 %v636
    %v987 = vunpack.c.l.b16 %v637
    %v988 = vunpack.c.h.b16 %v637
    %v989 = vunpack.c.l.b16 %v638
    %v990 = vunpack.c.h.b16 %v638
    %v991 = vunpack.c.l.b16 %v639
    %v992 = vunpack.c.h.b16 %v639
    %v993 = vunpack.c.l.b16 %v640
    %v994 = vunpack.c.h.b16 %v640
    %v995 = vunpack.c.l.b16 %v641
    %v996 = vunpack.c.h.b16 %v641
    %v997 = vunpack.c.l.b16 %v642
    %v998 = vunpack.c.h.b16 %v642
    %v999 = vunpack.c.l.b16 %v643
    %v1000 = vunpack.c.h.b16 %v643
    %v1001 = vunpack.c.l.b16 %v644
    %v1002 = vunpack.c.h.b16 %v644
    %v1003 = vunpack.c.l.b16 %v645
    %v1004 = vunpack.c.h.b16 %v645
    %v1005 = vunpack.c.l.b16 %v646
    %v1006 = vunpack.c.h.b16 %v646
    %v1007 = vunpack.c.l.b16 %v647
    %v1008 = vunpack.c.h.b16 %v647
    %v1009 = vunpack.c.l.b16 %v648
    %v1010 = vunpack.c.h.b16 %v648
    %v1011 = vunpack.c.l.b16 %v649
    %v1012 = vunpack.c.h.b16 %v649
    %v1013 = vunpack.c.l.b16 %v650
    %v1014 = vunpack.c.h.b16 %v650
    %v1015 = vunpack.c.l.b16 %v651
    %v1016 = vunpack.c.h.b16 %v651
    %v1017 = vunpack.c.l.b16 %v652
    %v1018 = vunpack.c.h.b16 %v652
    %v1019 = vunpack.c.l.b16 %v653
    %v1020 = vunpack.c.h.b16 %v653
    %v1021 = vunpack.c.l.b16 %v654
    %v1022 = vunpack.c.h.b16 %v654
    %v1023 = vunpack.c.l.b16 %v655
    %v1024 = vunpack.c.h.b16 %v655
    %v1025 = vunpack.c.l.b16 %v656
    %v1026 = vunpack.c.h.b16 %v656
    %v1027 = vunpack.c.l.b16 %v657
    %v1028 = vunpack.c.h.b16 %v657
    %v1029 = vunpack.c.l.b16 %v658
    %v1030 = vunpack.c.h.b16 %v658
    %v1031 = vunpack.c.l.b16 %v659
    %v1032 = vunpack.c.h.b16 %v659
    %v1033 = vunpack.c.l.b16 %v660
    %v1034 = vunpack.c.h.b16 %v660
    %v1035 = vunpack.c.l.b16 %v661
    %v1036 = vunpack.c.h.b16 %v661
    %v1037 = vunpack.c.l.b16 %v662
    %v1038 = vunpack.c.h.b16 %v662
    %v1039 = vunpack.c.l.b16 %v663
    %v1040 = vunpack.c.h.b16 %v663
    %v1041 = vunpack.c.l.b16 %v664
    %v1042 = vunpack.c.h.b16 %v664
    %v1043 = vunpack.c.l.b16 %v665
    %v1044 = vunpack.c.h.b16 %v665
    %v1045 = vunpack.c.l.b16 %v666
    %v1046 = vunpack.c.h.b16 %v666
    %v1047 = vunpack.c.l.b16 %v667
    %v1048 = vunpack.c.h.b16 %v667
    %v1049 = vunpack.c.l.b16 %v668
    %v1050 = vunpack.c.h.b16 %v668
    %v1051 = vunpack.c.l.b16 %v669
    %v1052 = vunpack.c.h.b16 %v669
    %v1053 = vunpack.c.l.b16 %v670
    %v1054 = vunpack.c.h.b16 %v670
    %v1055 = vunpack.c.l.b16 %v671
    %v1056 = vunpack.c.h.b16 %v671
    %v1057 = vunpack.c.l.b16 %v672
    %v1058 = vunpack.c.h.b16 %v672
    %v1059 = vunpack.c.l.b16 %v673
    %v1060 = vunpack.c.h.b16 %v673
    %v1061 = vunpack.c.l.b16 %v674
    %v1062 = vunpack.c.h.b16 %v674
    %v1063 = vunpack.c.l.b16 %v675
    %v1064 = vunpack.c.h.b16 %v675
    %v1065 = vunpack.c.l.b16 %v676
    %v1066 = vunpack.c.h.b16 %v676
    %v1067 = vunpack.c.l.b16 %v677
    %v1068 = vunpack.c.h.b16 %v677
    %v1069 = vunpack.c.l.b16 %v678
    %v1070 = vunpack.c.h.b16 %v678
    %v1071 = vunpack.c.l.b16 %v679
    %v1072 = vunpack.c.h.b16 %v679
    %v1073 = vunpack.c.l.b16 %v680
    %v1074 = vunpack.c.h.b16 %v680
    %v1075 = vpack.c.b16 %v823, %v819
    %v1076 = vpack.c.b16 %v824, %v820
    %v1077 = vpack.c.b16 %v825, %v821
    %v1078 = vpack.c.b16 %v826, %v822
    %v1079 = vpack.c.b16 %v831, %v827
    %v1080 = vpack.c.b16 %v832, %v828
    %v1081 = vpack.c.b16 %v833, %v829
    %v1082 = vpack.c.b16 %v834, %v830
    %v1083 = vpack.c.b16 %v839, %v835
    %v1084 = vpack.c.b16 %v840, %v836
    %v1085 = vpack.c.b16 %v841, %v837
    %v1086 = vpack.c.b16 %v842, %v838
    %v1087 = vpack.c.b16 %v847, %v843
    %v1088 = vpack.c.b16 %v848, %v844
    %v1089 = vpack.c.b16 %v849, %v845
    %v1090 = vpack.c.b16 %v850, %v846
    %v1091 = vpack.c.b16 %v855, %v851
    %v1092 = vpack.c.b16 %v856, %v852
    %v1093 = vpack.c.b16 %v857, %v853
    %v1094 = vpack.c.b16 %v858, %v854
    %v1095 = vpack.c.b16 %v863, %v859
    %v1096 = vpack.c.b16 %v864, %v860
    %v1097 = vpack.c.b16 %v865, %v861
    %v1098 = vpack.c.b16 %v866, %v862
    %v1099 = vpack.c.b16 %v871, %v867
    %v1100 = vpack.c.b16 %v872, %v868
    %v1101 = vpack.c.b16 %v873, %v869
    %v1102 = vpack.c.b16 %v874, %v870
    %v1103 = vpack.c.b16 %v879, %v875
    %v1104 = vpack.c.b16 %v880, %v876
    %v1105 = vpack.c.b16 %v881, %v877
    %v1106 = vpack.c.b16 %v882, %v878
    %v1107 = vpack.c.b16 %v887, %v883
    %v1108 = vpack.c.b16 %v888, %v884
    %v1109 = vpack.c.b16 %v889, %v885
    %v1110 = vpack.c.b16 %v890, %v886
    %v1111 = vpack.c.b16 %v895, %v891
    %v1112 = vpack.c.b16 %v896, %v892
    %v1113 = vpack.c.b16 %v897, %v893
    %v1114 = vpack.c.b16 %v898, %v894
    %v1115 = vpack.c.b16 %v903, %v899
    %v1116 = vpack.c.b16 %v904, %v900
    %v1117 = vpack.c.b16 %v905, %v901
    %v1118 = vpack.c.b16 %v906, %v902
    %v1119 = vpack.c.b16 %v911, %v907
    %v1120 = vpack.c.b16 %v912, %v908
    %v1121 = vpack.c.b16 %v913, %v909
    %v1122 = vpack.c.b16 %v914, %v910
    %v1123 = vpack.c.b16 %v919, %v915
    %v1124 = vpack.c.b16 %v920, %v916
    %v1125 = vpack.c.b16 %v921, %v917
    %v1126 = vpack.c.b16 %v922, %v918
    %v1127 = vpack.c.b16 %v927, %v923
    %v1128 = vpack.c.b16 %v928, %v924
    %v1129 = vpack.c.b16 %v929, %v925
    %v1130 = vpack.c.b16 %v930, %v926
    %v1131 = vpack.c.b16 %v935, %v931
    %v1132 = vpack.c.b16 %v936, %v932
    %v1133 = vpack.c.b16 %v937, %v933
    %v1134 = vpack.c.b16 %v938, %v934
    %v1135 = vpack.c.b16 %v943, %v939
    %v1136 = vpack.c.b16 %v944, %v940
    %v1137 = vpack.c.b16 %v945, %v941
    %v1138 = vpack.c.b16 %v946, %v942
    %v1139 = vpack.c.b16 %v951, %v947
    %v1140 = vpack.c.b16 %v952, %v948
    %v1141 = vpack.c.b16 %v953, %v949
    %v1142 = vpack.c.b16 %v954, %v950
    %v1143 = vpack.c.b16 %v959, %v955
    %v1144 = vpack.c.b16 %v960, %v956
    %v1145 = vpack.c.b16 %v961, %v957
    %v1146 = vpack.c.b16 %v962, %v958
    %v1147 = vpack.c.b16 %v967, %v963
    %v1148 = vpack.c.b16 %v968, %v964
    %v1149 = vpack.c.b16 %v969, %v965
    %v1150 = vpack.c.b16 %v970, %v966
    %v1151 = vpack.c.b16 %v975, %v971
    %v1152 = vpack.c.b16 %v976, %v972
    %v1153 = vpack.c.b16 %v977, %v973
    %v1154 = vpack.c.b16 %v978, %v974
    %v1155 = vpack.c.b16 %v983, %v979
    %v1156 = vpack.c.b16 %v984, %v980
    %v1157 = vpack.c.b16 %v985, %v981
    %v1158 = vpack.c.b16 %v986, %v982
    %v1159 = vpack.c.b16 %v991, %v987
    %v1160 = vpack.c.b16 %v992, %v988
    %v1161 = vpack.c.b16 %v993, %v989
    %v1162 = vpack.c.b16 %v994, %v990
    %v1163 = vpack.c.b16 %v999, %v995
    %v1164 = vpack.c.b16 %v1000, %v996
    %v1165 = vpack.c.b16 %v1001, %v997
    %v1166 = vpack.c.b16 %v1002, %v998
    %v1167 = vpack.c.b16 %v1007, %v1003
    %v1168 = vpack.c.b16 %v1008, %v1004
    %v1169 = vpack.c.b16 %v1009, %v1005
    %v1170 = vpack.c.b16 %v1010, %v1006
    %v1171 = vpack.c.b16 %v1015, %v1011
    %v1172 = vpack.c.b16 %v1016, %v1012
    %v1173 = vpack.c.b16 %v1017, %v1013
    %v1174 = vpack.c.b16 %v1018, %v1014
    %v1175 = vpack.c.b16 %v1023, %v1019
    %v1176 = vpack.c.b16 %v1024, %v1020
    %v1177 = vpack.c.b16 %v1025, %v1021
    %v1178 = vpack.c.b16 %v1026, %v1022
    %v1179 = vpack.c.b16 %v1031, %v1027
    %v1180 = vpack.c.b16 %v1032, %v1028
    %v1181 = vpack.c.b16 %v1033, %v1029
    %v1182 = vpack.c.b16 %v1034, %v1030
    %v1183 = vpack.c.b16 %v1039, %v1035
    %v1184 = vpack.c.b16 %v1040, %v1036
    %v1185 = vpack.c.b16 %v1041, %v1037
    %v1186 = vpack.c.b16 %v1042, %v1038
    %v1187 = vpack.c.b16 %v1047, %v1043
    %v1188 = vpack.c.b16 %v1048, %v1044
    %v1189 = vpack.c.b16 %v1049, %v1045
    %v1190 = vpack.c.b16 %v1050, %v1046
    %v1191 = vpack.c.b16 %v1055, %v1051
    %v1192 = vpack.c.b16 %v1056, %v1052
    %v1193 = vpack.c.b16 %v1057, %v1053
    %v1194 = vpack.c.b16 %v1058, %v1054
    %v1195 = vpack.c.b16 %v1063, %v1059
    %v1196 = vpack.c.b16 %v1064, %v1060
    %v1197 = vpack.c.b16 %v1065, %v1061
    %v1198 = vpack.c.b16 %v1066, %v1062
    %v1199 = vpack.c.b16 %v1071, %v1067
    %v1200 = vpack.c.b16 %v1072, %v1068
    %v1201 = vpack.c.b16 %v1073, %v1069
    %v1202 = vpack.c.b16 %v1074, %v1070
    %1331 = vmatpush.bf16.msra.mxu0 %v1103
    %1332 = vmatpush.bf16.msra.mxu0 %v1099
    %1333 = vmatpush.bf16.msra.mxu0 %v1095
    %1334 = vmatpush.bf16.msra.mxu0 %v1091
    %1335 = vmatpush.bf16.msra.mxu0 %v1087
    %1336 = vmatpush.bf16.msra.mxu0 %v1083
    %1337 = vmatpush.bf16.msra.mxu0 %v1079
    %1338 = vmatpush.bf16.msra.mxu0 %v1075
    %1339 = vmatmul.bf16.gmra.mxu0 %v549
    %v1340 = vpop.f32.mrf.mxu0
    %v1341 = vadd.f32 %v683, %v1340
    %v1342 = vpop.f32.mrf.mxu0
    %1343 = vdwg.mxu0
    %1344 = vmatpush.bf16.msra.mxu0 %v1135
    %1345 = vmatpush.bf16.msra.mxu0 %v1131
    %1346 = vmatpush.bf16.msra.mxu0 %v1127
    %1347 = vmatpush.bf16.msra.mxu0 %v1123
    %1348 = vmatpush.bf16.msra.mxu0 %v1119
    %1349 = vmatpush.bf16.msra.mxu0 %v1115
    %1350 = vmatpush.bf16.msra.mxu0 %v1111
    %1351 = vmatpush.bf16.msra.mxu0 %v1107
    %1352 = vmatmul.bf16.gmra.mxu0 %v550
    %v1353 = vpop.f32.mrf.mxu0
    %v1354 = vadd.f32 %v1341, %v1353
    %v1355 = vpop.f32.mrf.mxu0
    %1356 = vdwg.mxu0
    %1357 = vmatpush.bf16.msra.mxu0 %v1167
    %1358 = vmatpush.bf16.msra.mxu0 %v1163
    %1359 = vmatpush.bf16.msra.mxu0 %v1159
    %1360 = vmatpush.bf16.msra.mxu0 %v1155
    %1361 = vmatpush.bf16.msra.mxu0 %v1151
    %1362 = vmatpush.bf16.msra.mxu0 %v1147
    %1363 = vmatpush.bf16.msra.mxu0 %v1143
    %1364 = vmatpush.bf16.msra.mxu0 %v1139
    %1365 = vmatmul.bf16.gmra.mxu0 %v551
    %v1366 = vpop.f32.mrf.mxu0
    %v1367 = vadd.f32 %v1354, %v1366
    %v1368 = vpop.f32.mrf.mxu0
    %1369 = vdwg.mxu0
    %1370 = vmatpush.bf16.msra.mxu0 %v1199
    %1371 = vmatpush.bf16.msra.mxu0 %v1195
    %1372 = vmatpush.bf16.msra.mxu0 %v1191
    %1373 = vmatpush.bf16.msra.mxu0 %v1187
    %1374 = vmatpush.bf16.msra.mxu0 %v1183
    %1375 = vmatpush.bf16.msra.mxu0 %v1179
    %1376 = vmatpush.bf16.msra.mxu0 %v1175
    %1377 = vmatpush.bf16.msra.mxu0 %v1171
    %1378 = vmatmul.bf16.gmra.mxu0 %v552
    %v1379 = vpop.f32.mrf.mxu0
    %v1380 = vadd.f32 %v1367, %v1379
    %v1381 = vpop.f32.mrf.mxu0
    %1382 = vdwg.mxu0
    %1383 = vmatpush.bf16.msra.mxu0 %v1104
    %1384 = vmatpush.bf16.msra.mxu0 %v1100
    %1385 = vmatpush.bf16.msra.mxu0 %v1096
    %1386 = vmatpush.bf16.msra.mxu0 %v1092
    %1387 = vmatpush.bf16.msra.mxu0 %v1088
    %1388 = vmatpush.bf16.msra.mxu0 %v1084
    %1389 = vmatpush.bf16.msra.mxu0 %v1080
    %1390 = vmatpush.bf16.msra.mxu0 %v1076
    %1391 = vmatmul.bf16.gmra.mxu0 %v549
    %v1392 = vpop.f32.mrf.mxu0
    %v1393 = vadd.f32 %v684, %v1392
    %v1394 = vpop.f32.mrf.mxu0
    %1395 = vdwg.mxu0
    %1396 = vmatpush.bf16.msra.mxu0 %v1136
    %1397 = vmatpush.bf16.msra.mxu0 %v1132
    %1398 = vmatpush.bf16.msra.mxu0 %v1128
    %1399 = vmatpush.bf16.msra.mxu0 %v1124
    %1400 = vmatpush.bf16.msra.mxu0 %v1120
    %1401 = vmatpush.bf16.msra.mxu0 %v1116
    %1402 = vmatpush.bf16.msra.mxu0 %v1112
    %1403 = vmatpush.bf16.msra.mxu0 %v1108
    %1404 = vmatmul.bf16.gmra.mxu0 %v550
    %v1405 = vpop.f32.mrf.mxu0
    %v1406 = vadd.f32 %v1393, %v1405
    %v1407 = vpop.f32.mrf.mxu0
    %1408 = vdwg.mxu0
    %1409 = vmatpush.bf16.msra.mxu0 %v1168
    %1410 = vmatpush.bf16.msra.mxu0 %v1164
    %1411 = vmatpush.bf16.msra.mxu0 %v1160
    %1412 = vmatpush.bf16.msra.mxu0 %v1156
    %1413 = vmatpush.bf16.msra.mxu0 %v1152
    %1414 = vmatpush.bf16.msra.mxu0 %v1148
    %1415 = vmatpush.bf16.msra.mxu0 %v1144
    %1416 = vmatpush.bf16.msra.mxu0 %v1140
    %1417 = vmatmul.bf16.gmra.mxu0 %v551
    %v1418 = vpop.f32.mrf.mxu0
    %v1419 = vadd.f32 %v1406, %v1418
    %v1420 = vpop.f32.mrf.mxu0
    %1421 = vdwg.mxu0
    %1422 = vmatpush.bf16.msra.mxu0 %v1200
    %1423 = vmatpush.bf16.msra.mxu0 %v1196
    %1424 = vmatpush.bf16.msra.mxu0 %v1192
    %1425 = vmatpush.bf16.msra.mxu0 %v1188
    %1426 = vmatpush.bf16.msra.mxu0 %v1184
    %1427 = vmatpush.bf16.msra.mxu0 %v1180
    %1428 = vmatpush.bf16.msra.mxu0 %v1176
    %1429 = vmatpush.bf16.msra.mxu0 %v1172
    %1430 = vmatmul.bf16.gmra.mxu0 %v552
    %v1431 = vpop.f32.mrf.mxu0
    %v1432 = vadd.f32 %v1419, %v1431
    %v1433 = vpop.f32.mrf.mxu0
    %1434 = vdwg.mxu0
    %1435 = vmatpush.bf16.msra.mxu0 %v1105
    %1436 = vmatpush.bf16.msra.mxu0 %v1101
    %1437 = vmatpush.bf16.msra.mxu0 %v1097
    %1438 = vmatpush.bf16.msra.mxu0 %v1093
    %1439 = vmatpush.bf16.msra.mxu0 %v1089
    %1440 = vmatpush.bf16.msra.mxu0 %v1085
    %1441 = vmatpush.bf16.msra.mxu0 %v1081
    %1442 = vmatpush.bf16.msra.mxu0 %v1077
    %1443 = vmatmul.bf16.gmra.mxu0 %v549
    %v1444 = vpop.f32.mrf.mxu0
    %v1445 = vadd.f32 %v685, %v1444
    %v1446 = vpop.f32.mrf.mxu0
    %1447 = vdwg.mxu0
    %1448 = vmatpush.bf16.msra.mxu0 %v1137
    %1449 = vmatpush.bf16.msra.mxu0 %v1133
    %1450 = vmatpush.bf16.msra.mxu0 %v1129
    %1451 = vmatpush.bf16.msra.mxu0 %v1125
    %1452 = vmatpush.bf16.msra.mxu0 %v1121
    %1453 = vmatpush.bf16.msra.mxu0 %v1117
    %1454 = vmatpush.bf16.msra.mxu0 %v1113
    %1455 = vmatpush.bf16.msra.mxu0 %v1109
    %1456 = vmatmul.bf16.gmra.mxu0 %v550
    %v1457 = vpop.f32.mrf.mxu0
    %v1458 = vadd.f32 %v1445, %v1457
    %v1459 = vpop.f32.mrf.mxu0
    %1460 = vdwg.mxu0
    %1461 = vmatpush.bf16.msra.mxu0 %v1169
    %1462 = vmatpush.bf16.msra.mxu0 %v1165
    %1463 = vmatpush.bf16.msra.mxu0 %v1161
    %1464 = vmatpush.bf16.msra.mxu0 %v1157
    %1465 = vmatpush.bf16.msra.mxu0 %v1153
    %1466 = vmatpush.bf16.msra.mxu0 %v1149
    %1467 = vmatpush.bf16.msra.mxu0 %v1145
    %1468 = vmatpush.bf16.msra.mxu0 %v1141
    %1469 = vmatmul.bf16.gmra.mxu0 %v551
    %v1470 = vpop.f32.mrf.mxu0
    %v1471 = vadd.f32 %v1458, %v1470
    %v1472 = vpop.f32.mrf.mxu0
    %1473 = vdwg.mxu0
    %1474 = vmatpush.bf16.msra.mxu0 %v1201
    %1475 = vmatpush.bf16.msra.mxu0 %v1197
    %1476 = vmatpush.bf16.msra.mxu0 %v1193
    %1477 = vmatpush.bf16.msra.mxu0 %v1189
    %1478 = vmatpush.bf16.msra.mxu0 %v1185
    %1479 = vmatpush.bf16.msra.mxu0 %v1181
    %1480 = vmatpush.bf16.msra.mxu0 %v1177
    %1481 = vmatpush.bf16.msra.mxu0 %v1173
    %1482 = vmatmul.bf16.gmra.mxu0 %v552
    %v1483 = vpop.f32.mrf.mxu0
    %v1484 = vadd.f32 %v1471, %v1483
    %v1485 = vpop.f32.mrf.mxu0
    %1486 = vdwg.mxu0
    %1487 = vmatpush.bf16.msra.mxu0 %v1106
    %1488 = vmatpush.bf16.msra.mxu0 %v1102
    %1489 = vmatpush.bf16.msra.mxu0 %v1098
    %1490 = vmatpush.bf16.msra.mxu0 %v1094
    %1491 = vmatpush.bf16.msra.mxu0 %v1090
    %1492 = vmatpush.bf16.msra.mxu0 %v1086
    %1493 = vmatpush.bf16.msra.mxu0 %v1082
    %1494 = vmatpush.bf16.msra.mxu0 %v1078
    %1495 = vmatmul.bf16.gmra.mxu0 %v549
    %v1496 = vpop.f32.mrf.mxu0
    %v1497 = vadd.f32 %v686, %v1496
    %v1498 = vpop.f32.mrf.mxu0
    %1499 = vdwg.mxu0
    %1500 = vmatpush.bf16.msra.mxu0 %v1138
    %1501 = vmatpush.bf16.msra.mxu0 %v1134
    %1502 = vmatpush.bf16.msra.mxu0 %v1130
    %1503 = vmatpush.bf16.msra.mxu0 %v1126
    %1504 = vmatpush.bf16.msra.mxu0 %v1122
    %1505 = vmatpush.bf16.msra.mxu0 %v1118
    %1506 = vmatpush.bf16.msra.mxu0 %v1114
    %1507 = vmatpush.bf16.msra.mxu0 %v1110
    %1508 = vmatmul.bf16.gmra.mxu0 %v550
    %v1509 = vpop.f32.mrf.mxu0
    %v1510 = vadd.f32 %v1497, %v1509
    %v1511 = vpop.f32.mrf.mxu0
    %1512 = vdwg.mxu0
    %1513 = vmatpush.bf16.msra.mxu0 %v1170
    %1514 = vmatpush.bf16.msra.mxu0 %v1166
    %1515 = vmatpush.bf16.msra.mxu0 %v1162
    %1516 = vmatpush.bf16.msra.mxu0 %v1158
    %1517 = vmatpush.bf16.msra.mxu0 %v1154
    %1518 = vmatpush.bf16.msra.mxu0 %v1150
    %1519 = vmatpush.bf16.msra.mxu0 %v1146
    %1520 = vmatpush.bf16.msra.mxu0 %v1142
    %1521 = vmatmul.bf16.gmra.mxu0 %v551
    %v1522 = vpop.f32.mrf.mxu0
    %v1523 = vadd.f32 %v1510, %v1522
    %v1524 = vpop.f32.mrf.mxu0
    %1525 = vdwg.mxu0
    %1526 = vmatpush.bf16.msra.mxu0 %v1202
    %1527 = vmatpush.bf16.msra.mxu0 %v1198
    %1528 = vmatpush.bf16.msra.mxu0 %v1194
    %1529 = vmatpush.bf16.msra.mxu0 %v1190
    %1530 = vmatpush.bf16.msra.mxu0 %v1186
    %1531 = vmatpush.bf16.msra.mxu0 %v1182
    %1532 = vmatpush.bf16.msra.mxu0 %v1178
    %1533 = vmatpush.bf16.msra.mxu0 %v1174
    %1534 = vmatmul.bf16.gmra.mxu0 %v552
    %v1535 = vpop.f32.mrf.mxu0
    %v1536 = vadd.f32 %v1523, %v1535
    %v1537 = vpop.f32.mrf.mxu0
    %1538 = vdwg.mxu0
    %v1539 = vmax.f32 %v1380, 0.0
    %v1540 = vmax.f32 %v1432, 0.0
    %v1541 = vmax.f32 %v1484, 0.0
    %v1542 = vmax.f32 %v1536, 0.0
    %v1543 = vpack.c.bf16 %v1539, %v1539
    %v1544 = vpack.c.bf16 %v1540, %v1540
    %v1545 = vpack.c.bf16 %v1541, %v1541
    %v1546 = vpack.c.bf16 %v1542, %v1542
    %v1547 = vld [vmem:[#allocation15] sm:$0xff]
    %v1548 = vld [vmem:[#allocation15 + $0x8] sm:$0xff]
    %v1549 = vld [vmem:[#allocation15 + $0x10] sm:$0xff]
    %v1550 = vld [vmem:[#allocation15 + $0x18] sm:$0xff]
    %v1551 = vld [vmem:[#allocation15 + $0x20] sm:$0xff]
    %v1552 = vld [vmem:[#allocation15 + $0x28] sm:$0xff]
    %v1553 = vld [vmem:[#allocation15 + $0x30] sm:$0xff]
    %v1554 = vld [vmem:[#allocation15 + $0x38] sm:$0xff]
    %v1555 = vld [vmem:[#allocation15 + $0x40] sm:$0xff]
    %v1556 = vld [vmem:[#allocation15 + $0x48] sm:$0xff]
    %v1557 = vld [vmem:[#allocation15 + $0x50] sm:$0xff]
    %v1558 = vld [vmem:[#allocation15 + $0x58] sm:$0xff]
    %v1559 = vld [vmem:[#allocation15 + $0x60] sm:$0xff]
    %v1560 = vld [vmem:[#allocation15 + $0x68] sm:$0xff]
    %v1561 = vld [vmem:[#allocation15 + $0x70] sm:$0xff]
    %v1562 = vld [vmem:[#allocation15 + $0x78] sm:$0xff]
    %v1563 = vld [vmem:[#allocation15 + $0x80] sm:$0xff]
    %v1564 = vld [vmem:[#allocation15 + $0x88] sm:$0xff]
    %v1565 = vld [vmem:[#allocation15 + $0x90] sm:$0xff]
    %v1566 = vld [vmem:[#allocation15 + $0x98] sm:$0xff]
    %v1567 = vld [vmem:[#allocation15 + $0xa0] sm:$0xff]
    %v1568 = vld [vmem:[#allocation15 + $0xa8] sm:$0xff]
    %v1569 = vld [vmem:[#allocation15 + $0xb0] sm:$0xff]
    %v1570 = vld [vmem:[#allocation15 + $0xb8] sm:$0xff]
    %v1571 = vld [vmem:[#allocation15 + $0xc0] sm:$0xff]
    %v1572 = vld [vmem:[#allocation15 + $0xc8] sm:$0xff]
    %v1573 = vld [vmem:[#allocation15 + $0xd0] sm:$0xff]
    %v1574 = vld [vmem:[#allocation15 + $0xd8] sm:$0xff]
    %v1575 = vld [vmem:[#allocation15 + $0xe0] sm:$0xff]
    %v1576 = vld [vmem:[#allocation15 + $0xe8] sm:$0xff]
    %v1577 = vld [vmem:[#allocation15 + $0xf0] sm:$0xff]
    %v1578 = vld [vmem:[#allocation15 + $0xf8] sm:$0xff]
    %v1579 = vld [vmem:[#allocation15 + $0x100] sm:$0xff]
    %v1580 = vld [vmem:[#allocation15 + $0x108] sm:$0xff]
    %v1581 = vld [vmem:[#allocation15 + $0x110] sm:$0xff]
    %v1582 = vld [vmem:[#allocation15 + $0x118] sm:$0xff]
    %v1583 = vld [vmem:[#allocation15 + $0x120] sm:$0xff]
    %v1584 = vld [vmem:[#allocation15 + $0x128] sm:$0xff]
    %v1585 = vld [vmem:[#allocation15 + $0x130] sm:$0xff]
    %v1586 = vld [vmem:[#allocation15 + $0x138] sm:$0xff]
    %v1587 = vld [vmem:[#allocation15 + $0x140] sm:$0xff]
    %v1588 = vld [vmem:[#allocation15 + $0x148] sm:$0xff]
    %v1589 = vld [vmem:[#allocation15 + $0x150] sm:$0xff]
    %v1590 = vld [vmem:[#allocation15 + $0x158] sm:$0xff]
    %v1591 = vld [vmem:[#allocation15 + $0x160] sm:$0xff]
    %v1592 = vld [vmem:[#allocation15 + $0x168] sm:$0xff]
    %v1593 = vld [vmem:[#allocation15 + $0x170] sm:$0xff]
    %v1594 = vld [vmem:[#allocation15 + $0x178] sm:$0xff]
    %v1595 = vld [vmem:[#allocation15 + $0x180] sm:$0xff]
    %v1596 = vld [vmem:[#allocation15 + $0x188] sm:$0xff]
    %v1597 = vld [vmem:[#allocation15 + $0x190] sm:$0xff]
    %v1598 = vld [vmem:[#allocation15 + $0x198] sm:$0xff]
    %v1599 = vld [vmem:[#allocation15 + $0x1a0] sm:$0xff]
    %v1600 = vld [vmem:[#allocation15 + $0x1a8] sm:$0xff]
    %v1601 = vld [vmem:[#allocation15 + $0x1b0] sm:$0xff]
    %v1602 = vld [vmem:[#allocation15 + $0x1b8] sm:$0xff]
    %v1603 = vld [vmem:[#allocation15 + $0x1c0] sm:$0xff]
    %v1604 = vld [vmem:[#allocation15 + $0x1c8] sm:$0xff]
    %v1605 = vld [vmem:[#allocation15 + $0x1d0] sm:$0xff]
    %v1606 = vld [vmem:[#allocation15 + $0x1d8] sm:$0xff]
    %v1607 = vld [vmem:[#allocation15 + $0x1e0] sm:$0xff]
    %v1608 = vld [vmem:[#allocation15 + $0x1e8] sm:$0xff]
    %v1609 = vld [vmem:[#allocation15 + $0x1f0] sm:$0xff]
    %v1610 = vld [vmem:[#allocation15 + $0x1f8] sm:$0xff]
    %v1611 = vld [vmem:[#allocation15 + $0x200] sm:$0xff]
    %v1612 = vld [vmem:[#allocation15 + $0x208] sm:$0xff]
    %v1613 = vld [vmem:[#allocation15 + $0x210] sm:$0xff]
    %v1614 = vld [vmem:[#allocation15 + $0x218] sm:$0xff]
    %v1615 = vld [vmem:[#allocation15 + $0x220] sm:$0xff]
    %v1616 = vld [vmem:[#allocation15 + $0x228] sm:$0xff]
    %v1617 = vld [vmem:[#allocation15 + $0x230] sm:$0xff]
    %v1618 = vld [vmem:[#allocation15 + $0x238] sm:$0xff]
    %v1619 = vld [vmem:[#allocation15 + $0x240] sm:$0xff]
    %v1620 = vld [vmem:[#allocation15 + $0x248] sm:$0xff]
    %v1621 = vld [vmem:[#allocation15 + $0x250] sm:$0xff]
    %v1622 = vld [vmem:[#allocation15 + $0x258] sm:$0xff]
    %v1623 = vld [vmem:[#allocation15 + $0x260] sm:$0xff]
    %v1624 = vld [vmem:[#allocation15 + $0x268] sm:$0xff]
    %v1625 = vld [vmem:[#allocation15 + $0x270] sm:$0xff]
    %v1626 = vld [vmem:[#allocation15 + $0x278] sm:$0xff]
    %v1627 = vld [vmem:[#allocation15 + $0x280] sm:$0xff]
    %v1628 = vld [vmem:[#allocation15 + $0x288] sm:$0xff]
    %v1629 = vld [vmem:[#allocation15 + $0x290] sm:$0xff]
    %v1630 = vld [vmem:[#allocation15 + $0x298] sm:$0xff]
    %v1631 = vld [vmem:[#allocation15 + $0x2a0] sm:$0xff]
    %v1632 = vld [vmem:[#allocation15 + $0x2a8] sm:$0xff]
    %v1633 = vld [vmem:[#allocation15 + $0x2b0] sm:$0xff]
    %v1634 = vld [vmem:[#allocation15 + $0x2b8] sm:$0xff]
    %v1635 = vld [vmem:[#allocation15 + $0x2c0] sm:$0xff]
    %v1636 = vld [vmem:[#allocation15 + $0x2c8] sm:$0xff]
    %v1637 = vld [vmem:[#allocation15 + $0x2d0] sm:$0xff]
    %v1638 = vld [vmem:[#allocation15 + $0x2d8] sm:$0xff]
    %v1639 = vld [vmem:[#allocation15 + $0x2e0] sm:$0xff]
    %v1640 = vld [vmem:[#allocation15 + $0x2e8] sm:$0xff]
    %v1641 = vld [vmem:[#allocation15 + $0x2f0] sm:$0xff]
    %v1642 = vld [vmem:[#allocation15 + $0x2f8] sm:$0xff]
    %v1643 = vld [vmem:[#allocation15 + $0x300] sm:$0xff]
    %v1644 = vld [vmem:[#allocation15 + $0x308] sm:$0xff]
    %v1645 = vld [vmem:[#allocation15 + $0x310] sm:$0xff]
    %v1646 = vld [vmem:[#allocation15 + $0x318] sm:$0xff]
    %v1647 = vld [vmem:[#allocation15 + $0x320] sm:$0xff]
    %v1648 = vld [vmem:[#allocation15 + $0x328] sm:$0xff]
    %v1649 = vld [vmem:[#allocation15 + $0x330] sm:$0xff]
    %v1650 = vld [vmem:[#allocation15 + $0x338] sm:$0xff]
    %v1651 = vld [vmem:[#allocation15 + $0x340] sm:$0xff]
    %v1652 = vld [vmem:[#allocation15 + $0x348] sm:$0xff]
    %v1653 = vld [vmem:[#allocation15 + $0x350] sm:$0xff]
    %v1654 = vld [vmem:[#allocation15 + $0x358] sm:$0xff]
    %v1655 = vld [vmem:[#allocation15 + $0x360] sm:$0xff]
    %v1656 = vld [vmem:[#allocation15 + $0x368] sm:$0xff]
    %v1657 = vld [vmem:[#allocation15 + $0x370] sm:$0xff]
    %v1658 = vld [vmem:[#allocation15 + $0x378] sm:$0xff]
    %v1659 = vld [vmem:[#allocation15 + $0x380] sm:$0xff]
    %v1660 = vld [vmem:[#allocation15 + $0x388] sm:$0xff]
    %v1661 = vld [vmem:[#allocation15 + $0x390] sm:$0xff]
    %v1662 = vld [vmem:[#allocation15 + $0x398] sm:$0xff]
    %v1663 = vld [vmem:[#allocation15 + $0x3a0] sm:$0xff]
    %v1664 = vld [vmem:[#allocation15 + $0x3a8] sm:$0xff]
    %v1665 = vld [vmem:[#allocation15 + $0x3b0] sm:$0xff]
    %v1666 = vld [vmem:[#allocation15 + $0x3b8] sm:$0xff]
    %v1667 = vld [vmem:[#allocation15 + $0x3c0] sm:$0xff]
    %v1668 = vld [vmem:[#allocation15 + $0x3c8] sm:$0xff]
    %v1669 = vld [vmem:[#allocation15 + $0x3d0] sm:$0xff]
    %v1670 = vld [vmem:[#allocation15 + $0x3d8] sm:$0xff]
    %v1671 = vld [vmem:[#allocation15 + $0x3e0] sm:$0xff]
    %v1672 = vld [vmem:[#allocation15 + $0x3e8] sm:$0xff]
    %v1673 = vld [vmem:[#allocation15 + $0x3f0] sm:$0xff]
    %v1674 = vld [vmem:[#allocation15 + $0x3f8] sm:$0xff]
    %v1675 = vld [vmem:[%s16] sm:$0xf]
    %v1677 = vperm.slane %v1675, 0
    %v1678 = vperm.slane %v1675, 1
    %v1679 = vperm.slane %v1675, 2
    %v1680 = vperm.slane %v1675, 3
    %v1813 = vunpack.c.l.b16 %v1547
    %v1814 = vunpack.c.h.b16 %v1547
    %v1815 = vunpack.c.l.b16 %v1548
    %v1816 = vunpack.c.h.b16 %v1548
    %v1817 = vunpack.c.l.b16 %v1549
    %v1818 = vunpack.c.h.b16 %v1549
    %v1819 = vunpack.c.l.b16 %v1550
    %v1820 = vunpack.c.h.b16 %v1550
    %v1821 = vunpack.c.l.b16 %v1551
    %v1822 = vunpack.c.h.b16 %v1551
    %v1823 = vunpack.c.l.b16 %v1552
    %v1824 = vunpack.c.h.b16 %v1552
    %v1825 = vunpack.c.l.b16 %v1553
    %v1826 = vunpack.c.h.b16 %v1553
    %v1827 = vunpack.c.l.b16 %v1554
    %v1828 = vunpack.c.h.b16 %v1554
    %v1829 = vunpack.c.l.b16 %v1555
    %v1830 = vunpack.c.h.b16 %v1555
    %v1831 = vunpack.c.l.b16 %v1556
    %v1832 = vunpack.c.h.b16 %v1556
    %v1833 = vunpack.c.l.b16 %v1557
    %v1834 = vunpack.c.h.b16 %v1557
    %v1835 = vunpack.c.l.b16 %v1558
    %v1836 = vunpack.c.h.b16 %v1558
    %v1837 = vunpack.c.l.b16 %v1559
    %v1838 = vunpack.c.h.b16 %v1559
    %v1839 = vunpack.c.l.b16 %v1560
    %v1840 = vunpack.c.h.b16 %v1560
    %v1841 = vunpack.c.l.b16 %v1561
    %v1842 = vunpack.c.h.b16 %v1561
    %v1843 = vunpack.c.l.b16 %v1562
    %v1844 = vunpack.c.h.b16 %v1562
    %v1845 = vunpack.c.l.b16 %v1563
    %v1846 = vunpack.c.h.b16 %v1563
    %v1847 = vunpack.c.l.b16 %v1564
    %v1848 = vunpack.c.h.b16 %v1564
    %v1849 = vunpack.c.l.b16 %v1565
    %v1850 = vunpack.c.h.b16 %v1565
    %v1851 = vunpack.c.l.b16 %v1566
    %v1852 = vunpack.c.h.b16 %v1566
    %v1853 = vunpack.c.l.b16 %v1567
    %v1854 = vunpack.c.h.b16 %v1567
    %v1855 = vunpack.c.l.b16 %v1568
    %v1856 = vunpack.c.h.b16 %v1568
    %v1857 = vunpack.c.l.b16 %v1569
    %v1858 = vunpack.c.h.b16 %v1569
    %v1859 = vunpack.c.l.b16 %v1570
    %v1860 = vunpack.c.h.b16 %v1570
    %v1861 = vunpack.c.l.b16 %v1571
    %v1862 = vunpack.c.h.b16 %v1571
    %v1863 = vunpack.c.l.b16 %v1572
    %v1864 = vunpack.c.h.b16 %v1572
    %v1865 = vunpack.c.l.b16 %v1573
    %v1866 = vunpack.c.h.b16 %v1573
    %v1867 = vunpack.c.l.b16 %v1574
    %v1868 = vunpack.c.h.b16 %v1574
    %v1869 = vunpack.c.l.b16 %v1575
    %v1870 = vunpack.c.h.b16 %v1575
    %v1871 = vunpack.c.l.b16 %v1576
    %v1872 = vunpack.c.h.b16 %v1576
    %v1873 = vunpack.c.l.b16 %v1577
    %v1874 = vunpack.c.h.b16 %v1577
    %v1875 = vunpack.c.l.b16 %v1578
    %v1876 = vunpack.c.h.b16 %v1578
    %v1877 = vunpack.c.l.b16 %v1579
    %v1878 = vunpack.c.h.b16 %v1579
    %v1879 = vunpack.c.l.b16 %v1580
    %v1880 = vunpack.c.h.b16 %v1580
    %v1881 = vunpack.c.l.b16 %v1581
    %v1882 = vunpack.c.h.b16 %v1581
    %v1883 = vunpack.c.l.b16 %v1582
    %v1884 = vunpack.c.h.b16 %v1582
    %v1885 = vunpack.c.l.b16 %v1583
    %v1886 = vunpack.c.h.b16 %v1583
    %v1887 = vunpack.c.l.b16 %v1584
    %v1888 = vunpack.c.h.b16 %v1584
    %v1889 = vunpack.c.l.b16 %v1585
    %v1890 = vunpack.c.h.b16 %v1585
    %v1891 = vunpack.c.l.b16 %v1586
    %v1892 = vunpack.c.h.b16 %v1586
    %v1893 = vunpack.c.l.b16 %v1587
    %v1894 = vunpack.c.h.b16 %v1587
    %v1895 = vunpack.c.l.b16 %v1588
    %v1896 = vunpack.c.h.b16 %v1588
    %v1897 = vunpack.c.l.b16 %v1589
    %v1898 = vunpack.c.h.b16 %v1589
    %v1899 = vunpack.c.l.b16 %v1590
    %v1900 = vunpack.c.h.b16 %v1590
    %v1901 = vunpack.c.l.b16 %v1591
    %v1902 = vunpack.c.h.b16 %v1591
    %v1903 = vunpack.c.l.b16 %v1592
    %v1904 = vunpack.c.h.b16 %v1592
    %v1905 = vunpack.c.l.b16 %v1593
    %v1906 = vunpack.c.h.b16 %v1593
    %v1907 = vunpack.c.l.b16 %v1594
    %v1908 = vunpack.c.h.b16 %v1594
    %v1909 = vunpack.c.l.b16 %v1595
    %v1910 = vunpack.c.h.b16 %v1595
    %v1911 = vunpack.c.l.b16 %v1596
    %v1912 = vunpack.c.h.b16 %v1596
    %v1913 = vunpack.c.l.b16 %v1597
    %v1914 = vunpack.c.h.b16 %v1597
    %v1915 = vunpack.c.l.b16 %v1598
    %v1916 = vunpack.c.h.b16 %v1598
    %v1917 = vunpack.c.l.b16 %v1599
    %v1918 = vunpack.c.h.b16 %v1599
    %v1919 = vunpack.c.l.b16 %v1600
    %v1920 = vunpack.c.h.b16 %v1600
    %v1921 = vunpack.c.l.b16 %v1601
    %v1922 = vunpack.c.h.b16 %v1601
    %v1923 = vunpack.c.l.b16 %v1602
    %v1924 = vunpack.c.h.b16 %v1602
    %v1925 = vunpack.c.l.b16 %v1603
    %v1926 = vunpack.c.h.b16 %v1603
    %v1927 = vunpack.c.l.b16 %v1604
    %v1928 = vunpack.c.h.b16 %v1604
    %v1929 = vunpack.c.l.b16 %v1605
    %v1930 = vunpack.c.h.b16 %v1605
    %v1931 = vunpack.c.l.b16 %v1606
    %v1932 = vunpack.c.h.b16 %v1606
    %v1933 = vunpack.c.l.b16 %v1607
    %v1934 = vunpack.c.h.b16 %v1607
    %v1935 = vunpack.c.l.b16 %v1608
    %v1936 = vunpack.c.h.b16 %v1608
    %v1937 = vunpack.c.l.b16 %v1609
    %v1938 = vunpack.c.h.b16 %v1609
    %v1939 = vunpack.c.l.b16 %v1610
    %v1940 = vunpack.c.h.b16 %v1610
    %v1941 = vunpack.c.l.b16 %v1611
    %v1942 = vunpack.c.h.b16 %v1611
    %v1943 = vunpack.c.l.b16 %v1612
    %v1944 = vunpack.c.h.b16 %v1612
    %v1945 = vunpack.c.l.b16 %v1613
    %v1946 = vunpack.c.h.b16 %v1613
    %v1947 = vunpack.c.l.b16 %v1614
    %v1948 = vunpack.c.h.b16 %v1614
    %v1949 = vunpack.c.l.b16 %v1615
    %v1950 = vunpack.c.h.b16 %v1615
    %v1951 = vunpack.c.l.b16 %v1616
    %v1952 = vunpack.c.h.b16 %v1616
    %v1953 = vunpack.c.l.b16 %v1617
    %v1954 = vunpack.c.h.b16 %v1617
    %v1955 = vunpack.c.l.b16 %v1618
    %v1956 = vunpack.c.h.b16 %v1618
    %v1957 = vunpack.c.l.b16 %v1619
    %v1958 = vunpack.c.h.b16 %v1619
    %v1959 = vunpack.c.l.b16 %v1620
    %v1960 = vunpack.c.h.b16 %v1620
    %v1961 = vunpack.c.l.b16 %v1621
    %v1962 = vunpack.c.h.b16 %v1621
    %v1963 = vunpack.c.l.b16 %v1622
    %v1964 = vunpack.c.h.b16 %v1622
    %v1965 = vunpack.c.l.b16 %v1623
    %v1966 = vunpack.c.h.b16 %v1623
    %v1967 = vunpack.c.l.b16 %v1624
    %v1968 = vunpack.c.h.b16 %v1624
    %v1969 = vunpack.c.l.b16 %v1625
    %v1970 = vunpack.c.h.b16 %v1625
    %v1971 = vunpack.c.l.b16 %v1626
    %v1972 = vunpack.c.h.b16 %v1626
    %v1973 = vunpack.c.l.b16 %v1627
    %v1974 = vunpack.c.h.b16 %v1627
    %v1975 = vunpack.c.l.b16 %v1628
    %v1976 = vunpack.c.h.b16 %v1628
    %v1977 = vunpack.c.l.b16 %v1629
    %v1978 = vunpack.c.h.b16 %v1629
    %v1979 = vunpack.c.l.b16 %v1630
    %v1980 = vunpack.c.h.b16 %v1630
    %v1981 = vunpack.c.l.b16 %v1631
    %v1982 = vunpack.c.h.b16 %v1631
    %v1983 = vunpack.c.l.b16 %v1632
    %v1984 = vunpack.c.h.b16 %v1632
    %v1985 = vunpack.c.l.b16 %v1633
    %v1986 = vunpack.c.h.b16 %v1633
    %v1987 = vunpack.c.l.b16 %v1634
    %v1988 = vunpack.c.h.b16 %v1634
    %v1989 = vunpack.c.l.b16 %v1635
    %v1990 = vunpack.c.h.b16 %v1635
    %v1991 = vunpack.c.l.b16 %v1636
    %v1992 = vunpack.c.h.b16 %v1636
    %v1993 = vunpack.c.l.b16 %v1637
    %v1994 = vunpack.c.h.b16 %v1637
    %v1995 = vunpack.c.l.b16 %v1638
    %v1996 = vunpack.c.h.b16 %v1638
    %v1997 = vunpack.c.l.b16 %v1639
    %v1998 = vunpack.c.h.b16 %v1639
    %v1999 = vunpack.c.l.b16 %v1640
    %v2000 = vunpack.c.h.b16 %v1640
    %v2001 = vunpack.c.l.b16 %v1641
    %v2002 = vunpack.c.h.b16 %v1641
    %v2003 = vunpack.c.l.b16 %v1642
    %v2004 = vunpack.c.h.b16 %v1642
    %v2005 = vunpack.c.l.b16 %v1643
    %v2006 = vunpack.c.h.b16 %v1643
    %v2007 = vunpack.c.l.b16 %v1644
    %v2008 = vunpack.c.h.b16 %v1644
    %v2009 = vunpack.c.l.b16 %v1645
    %v2010 = vunpack.c.h.b16 %v1645
    %v2011 = vunpack.c.l.b16 %v1646
    %v2012 = vunpack.c.h.b16 %v1646
    %v2013 = vunpack.c.l.b16 %v1647
    %v2014 = vunpack.c.h.b16 %v1647
    %v2015 = vunpack.c.l.b16 %v1648
    %v2016 = vunpack.c.h.b16 %v1648
    %v2017 = vunpack.c.l.b16 %v1649
    %v2018 = vunpack.c.h.b16 %v1649
    %v2019 = vunpack.c.l.b16 %v1650
    %v2020 = vunpack.c.h.b16 %v1650
    %v2021 = vunpack.c.l.b16 %v1651
    %v2022 = vunpack.c.h.b16 %v1651
    %v2023 = vunpack.c.l.b16 %v1652
    %v2024 = vunpack.c.h.b16 %v1652
    %v2025 = vunpack.c.l.b16 %v1653
    %v2026 = vunpack.c.h.b16 %v1653
    %v2027 = vunpack.c.l.b16 %v1654
    %v2028 = vunpack.c.h.b16 %v1654
    %v2029 = vunpack.c.l.b16 %v1655
    %v2030 = vunpack.c.h.b16 %v1655
    %v2031 = vunpack.c.l.b16 %v1656
    %v2032 = vunpack.c.h.b16 %v1656
    %v2033 = vunpack.c.l.b16 %v1657
    %v2034 = vunpack.c.h.b16 %v1657
    %v2035 = vunpack.c.l.b16 %v1658
    %v2036 = vunpack.c.h.b16 %v1658
    %v2037 = vunpack.c.l.b16 %v1659
    %v2038 = vunpack.c.h.b16 %v1659
    %v2039 = vunpack.c.l.b16 %v1660
    %v2040 = vunpack.c.h.b16 %v1660
    %v2041 = vunpack.c.l.b16 %v1661
    %v2042 = vunpack.c.h.b16 %v1661
    %v2043 = vunpack.c.l.b16 %v1662
    %v2044 = vunpack.c.h.b16 %v1662
    %v2045 = vunpack.c.l.b16 %v1663
    %v2046 = vunpack.c.h.b16 %v1663
    %v2047 = vunpack.c.l.b16 %v1664
    %v2048 = vunpack.c.h.b16 %v1664
    %v2049 = vunpack.c.l.b16 %v1665
    %v2050 = vunpack.c.h.b16 %v1665
    %v2051 = vunpack.c.l.b16 %v1666
    %v2052 = vunpack.c.h.b16 %v1666
    %v2053 = vunpack.c.l.b16 %v1667
    %v2054 = vunpack.c.h.b16 %v1667
    %v2055 = vunpack.c.l.b16 %v1668
    %v2056 = vunpack.c.h.b16 %v1668
    %v2057 = vunpack.c.l.b16 %v1669
    %v2058 = vunpack.c.h.b16 %v1669
    %v2059 = vunpack.c.l.b16 %v1670
    %v2060 = vunpack.c.h.b16 %v1670
    %v2061 = vunpack.c.l.b16 %v1671
    %v2062 = vunpack.c.h.b16 %v1671
    %v2063 = vunpack.c.l.b16 %v1672
    %v2064 = vunpack.c.h.b16 %v1672
    %v2065 = vunpack.c.l.b16 %v1673
    %v2066 = vunpack.c.h.b16 %v1673
    %v2067 = vunpack.c.l.b16 %v1674
    %v2068 = vunpack.c.h.b16 %v1674
    %v2069 = vpack.c.b16 %v1817, %v1813
    %v2070 = vpack.c.b16 %v1818, %v1814
    %v2071 = vpack.c.b16 %v1819, %v1815
    %v2072 = vpack.c.b16 %v1820, %v1816
    %v2073 = vpack.c.b16 %v1825, %v1821
    %v2074 = vpack.c.b16 %v1826, %v1822
    %v2075 = vpack.c.b16 %v1827, %v1823
    %v2076 = vpack.c.b16 %v1828, %v1824
    %v2077 = vpack.c.b16 %v1833, %v1829
    %v2078 = vpack.c.b16 %v1834, %v1830
    %v2079 = vpack.c.b16 %v1835, %v1831
    %v2080 = vpack.c.b16 %v1836, %v1832
    %v2081 = vpack.c.b16 %v1841, %v1837
    %v2082 = vpack.c.b16 %v1842, %v1838
    %v2083 = vpack.c.b16 %v1843, %v1839
    %v2084 = vpack.c.b16 %v1844, %v1840
    %v2085 = vpack.c.b16 %v1849, %v1845
    %v2086 = vpack.c.b16 %v1850, %v1846
    %v2087 = vpack.c.b16 %v1851, %v1847
    %v2088 = vpack.c.b16 %v1852, %v1848
    %v2089 = vpack.c.b16 %v1857, %v1853
    %v2090 = vpack.c.b16 %v1858, %v1854
    %v2091 = vpack.c.b16 %v1859, %v1855
    %v2092 = vpack.c.b16 %v1860, %v1856
    %v2093 = vpack.c.b16 %v1865, %v1861
    %v2094 = vpack.c.b16 %v1866, %v1862
    %v2095 = vpack.c.b16 %v1867, %v1863
    %v2096 = vpack.c.b16 %v1868, %v1864
    %v2097 = vpack.c.b16 %v1873, %v1869
    %v2098 = vpack.c.b16 %v1874, %v1870
    %v2099 = vpack.c.b16 %v1875, %v1871
    %v2100 = vpack.c.b16 %v1876, %v1872
    %v2101 = vpack.c.b16 %v1881, %v1877
    %v2102 = vpack.c.b16 %v1882, %v1878
    %v2103 = vpack.c.b16 %v1883, %v1879
    %v2104 = vpack.c.b16 %v1884, %v1880
    %v2105 = vpack.c.b16 %v1889, %v1885
    %v2106 = vpack.c.b16 %v1890, %v1886
    %v2107 = vpack.c.b16 %v1891, %v1887
    %v2108 = vpack.c.b16 %v1892, %v1888
    %v2109 = vpack.c.b16 %v1897, %v1893
    %v2110 = vpack.c.b16 %v1898, %v1894
    %v2111 = vpack.c.b16 %v1899, %v1895
    %v2112 = vpack.c.b16 %v1900, %v1896
    %v2113 = vpack.c.b16 %v1905, %v1901
    %v2114 = vpack.c.b16 %v1906, %v1902
    %v2115 = vpack.c.b16 %v1907, %v1903
    %v2116 = vpack.c.b16 %v1908, %v1904
    %v2117 = vpack.c.b16 %v1913, %v1909
    %v2118 = vpack.c.b16 %v1914, %v1910
    %v2119 = vpack.c.b16 %v1915, %v1911
    %v2120 = vpack.c.b16 %v1916, %v1912
    %v2121 = vpack.c.b16 %v1921, %v1917
    %v2122 = vpack.c.b16 %v1922, %v1918
    %v2123 = vpack.c.b16 %v1923, %v1919
    %v2124 = vpack.c.b16 %v1924, %v1920
    %v2125 = vpack.c.b16 %v1929, %v1925
    %v2126 = vpack.c.b16 %v1930, %v1926
    %v2127 = vpack.c.b16 %v1931, %v1927
    %v2128 = vpack.c.b16 %v1932, %v1928
    %v2129 = vpack.c.b16 %v1937, %v1933
    %v2130 = vpack.c.b16 %v1938, %v1934
    %v2131 = vpack.c.b16 %v1939, %v1935
    %v2132 = vpack.c.b16 %v1940, %v1936
    %v2133 = vpack.c.b16 %v1945, %v1941
    %v2134 = vpack.c.b16 %v1946, %v1942
    %v2135 = vpack.c.b16 %v1947, %v1943
    %v2136 = vpack.c.b16 %v1948, %v1944
    %v2137 = vpack.c.b16 %v1953, %v1949
    %v2138 = vpack.c.b16 %v1954, %v1950
    %v2139 = vpack.c.b16 %v1955, %v1951
    %v2140 = vpack.c.b16 %v1956, %v1952
    %v2141 = vpack.c.b16 %v1961, %v1957
    %v2142 = vpack.c.b16 %v1962, %v1958
    %v2143 = vpack.c.b16 %v1963, %v1959
    %v2144 = vpack.c.b16 %v1964, %v1960
    %v2145 = vpack.c.b16 %v1969, %v1965
    %v2146 = vpack.c.b16 %v1970, %v1966
    %v2147 = vpack.c.b16 %v1971, %v1967
    %v2148 = vpack.c.b16 %v1972, %v1968
    %v2149 = vpack.c.b16 %v1977, %v1973
    %v2150 = vpack.c.b16 %v1978, %v1974
    %v2151 = vpack.c.b16 %v1979, %v1975
    %v2152 = vpack.c.b16 %v1980, %v1976
    %v2153 = vpack.c.b16 %v1985, %v1981
    %v2154 = vpack.c.b16 %v1986, %v1982
    %v2155 = vpack.c.b16 %v1987, %v1983
    %v2156 = vpack.c.b16 %v1988, %v1984
    %v2157 = vpack.c.b16 %v1993, %v1989
    %v2158 = vpack.c.b16 %v1994, %v1990
    %v2159 = vpack.c.b16 %v1995, %v1991
    %v2160 = vpack.c.b16 %v1996, %v1992
    %v2161 = vpack.c.b16 %v2001, %v1997
    %v2162 = vpack.c.b16 %v2002, %v1998
    %v2163 = vpack.c.b16 %v2003, %v1999
    %v2164 = vpack.c.b16 %v2004, %v2000
    %v2165 = vpack.c.b16 %v2009, %v2005
    %v2166 = vpack.c.b16 %v2010, %v2006
    %v2167 = vpack.c.b16 %v2011, %v2007
    %v2168 = vpack.c.b16 %v2012, %v2008
    %v2169 = vpack.c.b16 %v2017, %v2013
    %v2170 = vpack.c.b16 %v2018, %v2014
    %v2171 = vpack.c.b16 %v2019, %v2015
    %v2172 = vpack.c.b16 %v2020, %v2016
    %v2173 = vpack.c.b16 %v2025, %v2021
    %v2174 = vpack.c.b16 %v2026, %v2022
    %v2175 = vpack.c.b16 %v2027, %v2023
    %v2176 = vpack.c.b16 %v2028, %v2024
    %v2177 = vpack.c.b16 %v2033, %v2029
    %v2178 = vpack.c.b16 %v2034, %v2030
    %v2179 = vpack.c.b16 %v2035, %v2031
    %v2180 = vpack.c.b16 %v2036, %v2032
    %v2181 = vpack.c.b16 %v2041, %v2037
    %v2182 = vpack.c.b16 %v2042, %v2038
    %v2183 = vpack.c.b16 %v2043, %v2039
    %v2184 = vpack.c.b16 %v2044, %v2040
    %v2185 = vpack.c.b16 %v2049, %v2045
    %v2186 = vpack.c.b16 %v2050, %v2046
    %v2187 = vpack.c.b16 %v2051, %v2047
    %v2188 = vpack.c.b16 %v2052, %v2048
    %v2189 = vpack.c.b16 %v2057, %v2053
    %v2190 = vpack.c.b16 %v2058, %v2054
    %v2191 = vpack.c.b16 %v2059, %v2055
    %v2192 = vpack.c.b16 %v2060, %v2056
    %v2193 = vpack.c.b16 %v2065, %v2061
    %v2194 = vpack.c.b16 %v2066, %v2062
    %v2195 = vpack.c.b16 %v2067, %v2063
    %v2196 = vpack.c.b16 %v2068, %v2064
    %2325 = vmatpush.bf16.msra.mxu0 %v2097
    %2326 = vmatpush.bf16.msra.mxu0 %v2093
    %2327 = vmatpush.bf16.msra.mxu0 %v2089
    %2328 = vmatpush.bf16.msra.mxu0 %v2085
    %2329 = vmatpush.bf16.msra.mxu0 %v2081
    %2330 = vmatpush.bf16.msra.mxu0 %v2077
    %2331 = vmatpush.bf16.msra.mxu0 %v2073
    %2332 = vmatpush.bf16.msra.mxu0 %v2069
    %2333 = vmatmul.bf16.gmra.mxu0 %v1543
    %v2334 = vpop.f32.mrf.mxu0
    %v2335 = vadd.f32 %v1677, %v2334
    %v2336 = vpop.f32.mrf.mxu0
    %2337 = vdwg.mxu0
    %2338 = vmatpush.bf16.msra.mxu0 %v2129
    %2339 = vmatpush.bf16.msra.mxu0 %v2125
    %2340 = vmatpush.bf16.msra.mxu0 %v2121
    %2341 = vmatpush.bf16.msra.mxu0 %v2117
    %2342 = vmatpush.bf16.msra.mxu0 %v2113
    %2343 = vmatpush.bf16.msra.mxu0 %v2109
    %2344 = vmatpush.bf16.msra.mxu0 %v2105
    %2345 = vmatpush.bf16.msra.mxu0 %v2101
    %2346 = vmatmul.bf16.gmra.mxu0 %v1544
    %v2347 = vpop.f32.mrf.mxu0
    %v2348 = vadd.f32 %v2335, %v2347
    %v2349 = vpop.f32.mrf.mxu0
    %2350 = vdwg.mxu0
    %2351 = vmatpush.bf16.msra.mxu0 %v2161
    %2352 = vmatpush.bf16.msra.mxu0 %v2157
    %2353 = vmatpush.bf16.msra.mxu0 %v2153
    %2354 = vmatpush.bf16.msra.mxu0 %v2149
    %2355 = vmatpush.bf16.msra.mxu0 %v2145
    %2356 = vmatpush.bf16.msra.mxu0 %v2141
    %2357 = vmatpush.bf16.msra.mxu0 %v2137
    %2358 = vmatpush.bf16.msra.mxu0 %v2133
    %2359 = vmatmul.bf16.gmra.mxu0 %v1545
    %v2360 = vpop.f32.mrf.mxu0
    %v2361 = vadd.f32 %v2348, %v2360
    %v2362 = vpop.f32.mrf.mxu0
    %2363 = vdwg.mxu0
    %2364 = vmatpush.bf16.msra.mxu0 %v2193
    %2365 = vmatpush.bf16.msra.mxu0 %v2189
    %2366 = vmatpush.bf16.msra.mxu0 %v2185
    %2367 = vmatpush.bf16.msra.mxu0 %v2181
    %2368 = vmatpush.bf16.msra.mxu0 %v2177
    %2369 = vmatpush.bf16.msra.mxu0 %v2173
    %2370 = vmatpush.bf16.msra.mxu0 %v2169
    %2371 = vmatpush.bf16.msra.mxu0 %v2165
    %2372 = vmatmul.bf16.gmra.mxu0 %v1546
    %v2373 = vpop.f32.mrf.mxu0
    %v2374 = vadd.f32 %v2361, %v2373
    %v2375 = vpop.f32.mrf.mxu0
    %2376 = vdwg.mxu0
    %2377 = vmatpush.bf16.msra.mxu0 %v2098
    %2378 = vmatpush.bf16.msra.mxu0 %v2094
    %2379 = vmatpush.bf16.msra.mxu0 %v2090
    %2380 = vmatpush.bf16.msra.mxu0 %v2086
    %2381 = vmatpush.bf16.msra.mxu0 %v2082
    %2382 = vmatpush.bf16.msra.mxu0 %v2078
    %2383 = vmatpush.bf16.msra.mxu0 %v2074
    %2384 = vmatpush.bf16.msra.mxu0 %v2070
    %2385 = vmatmul.bf16.gmra.mxu0 %v1543
    %v2386 = vpop.f32.mrf.mxu0
    %v2387 = vadd.f32 %v1678, %v2386
    %v2388 = vpop.f32.mrf.mxu0
    %2389 = vdwg.mxu0
    %2390 = vmatpush.bf16.msra.mxu0 %v2130
    %2391 = vmatpush.bf16.msra.mxu0 %v2126
    %2392 = vmatpush.bf16.msra.mxu0 %v2122
    %2393 = vmatpush.bf16.msra.mxu0 %v2118
    %2394 = vmatpush.bf16.msra.mxu0 %v2114
    %2395 = vmatpush.bf16.msra.mxu0 %v2110
    %2396 = vmatpush.bf16.msra.mxu0 %v2106
    %2397 = vmatpush.bf16.msra.mxu0 %v2102
    %2398 = vmatmul.bf16.gmra.mxu0 %v1544
    %v2399 = vpop.f32.mrf.mxu0
    %v2400 = vadd.f32 %v2387, %v2399
    %v2401 = vpop.f32.mrf.mxu0
    %2402 = vdwg.mxu0
    %2403 = vmatpush.bf16.msra.mxu0 %v2162
    %2404 = vmatpush.bf16.msra.mxu0 %v2158
    %2405 = vmatpush.bf16.msra.mxu0 %v2154
    %2406 = vmatpush.bf16.msra.mxu0 %v2150
    %2407 = vmatpush.bf16.msra.mxu0 %v2146
    %2408 = vmatpush.bf16.msra.mxu0 %v2142
    %2409 = vmatpush.bf16.msra.mxu0 %v2138
    %2410 = vmatpush.bf16.msra.mxu0 %v2134
    %2411 = vmatmul.bf16.gmra.mxu0 %v1545
    %v2412 = vpop.f32.mrf.mxu0
    %v2413 = vadd.f32 %v2400, %v2412
    %v2414 = vpop.f32.mrf.mxu0
    %2415 = vdwg.mxu0
    %2416 = vmatpush.bf16.msra.mxu0 %v2194
    %2417 = vmatpush.bf16.msra.mxu0 %v2190
    %2418 = vmatpush.bf16.msra.mxu0 %v2186
    %2419 = vmatpush.bf16.msra.mxu0 %v2182
    %2420 = vmatpush.bf16.msra.mxu0 %v2178
    %2421 = vmatpush.bf16.msra.mxu0 %v2174
    %2422 = vmatpush.bf16.msra.mxu0 %v2170
    %2423 = vmatpush.bf16.msra.mxu0 %v2166
    %2424 = vmatmul.bf16.gmra.mxu0 %v1546
    %v2425 = vpop.f32.mrf.mxu0
    %v2426 = vadd.f32 %v2413, %v2425
    %v2427 = vpop.f32.mrf.mxu0
    %2428 = vdwg.mxu0
    %2429 = vmatpush.bf16.msra.mxu0 %v2099
    %2430 = vmatpush.bf16.msra.mxu0 %v2095
    %2431 = vmatpush.bf16.msra.mxu0 %v2091
    %2432 = vmatpush.bf16.msra.mxu0 %v2087
    %2433 = vmatpush.bf16.msra.mxu0 %v2083
    %2434 = vmatpush.bf16.msra.mxu0 %v2079
    %2435 = vmatpush.bf16.msra.mxu0 %v2075
    %2436 = vmatpush.bf16.msra.mxu0 %v2071
    %2437 = vmatmul.bf16.gmra.mxu0 %v1543
    %v2438 = vpop.f32.mrf.mxu0
    %v2439 = vadd.f32 %v1679, %v2438
    %v2440 = vpop.f32.mrf.mxu0
    %2441 = vdwg.mxu0
    %2442 = vmatpush.bf16.msra.mxu0 %v2131
    %2443 = vmatpush.bf16.msra.mxu0 %v2127
    %2444 = vmatpush.bf16.msra.mxu0 %v2123
    %2445 = vmatpush.bf16.msra.mxu0 %v2119
    %2446 = vmatpush.bf16.msra.mxu0 %v2115
    %2447 = vmatpush.bf16.msra.mxu0 %v2111
    %2448 = vmatpush.bf16.msra.mxu0 %v2107
    %2449 = vmatpush.bf16.msra.mxu0 %v2103
    %2450 = vmatmul.bf16.gmra.mxu0 %v1544
    %v2451 = vpop.f32.mrf.mxu0
    %v2452 = vadd.f32 %v2439, %v2451
    %v2453 = vpop.f32.mrf.mxu0
    %2454 = vdwg.mxu0
    %2455 = vmatpush.bf16.msra.mxu0 %v2163
    %2456 = vmatpush.bf16.msra.mxu0 %v2159
    %2457 = vmatpush.bf16.msra.mxu0 %v2155
    %2458 = vmatpush.bf16.msra.mxu0 %v2151
    %2459 = vmatpush.bf16.msra.mxu0 %v2147
    %2460 = vmatpush.bf16.msra.mxu0 %v2143
    %2461 = vmatpush.bf16.msra.mxu0 %v2139
    %2462 = vmatpush.bf16.msra.mxu0 %v2135
    %2463 = vmatmul.bf16.gmra.mxu0 %v1545
    %v2464 = vpop.f32.mrf.mxu0
    %v2465 = vadd.f32 %v2452, %v2464
    %v2466 = vpop.f32.mrf.mxu0
    %2467 = vdwg.mxu0
    %2468 = vmatpush.bf16.msra.mxu0 %v2195
    %2469 = vmatpush.bf16.msra.mxu0 %v2191
    %2470 = vmatpush.bf16.msra.mxu0 %v2187
    %2471 = vmatpush.bf16.msra.mxu0 %v2183
    %2472 = vmatpush.bf16.msra.mxu0 %v2179
    %2473 = vmatpush.bf16.msra.mxu0 %v2175
    %2474 = vmatpush.bf16.msra.mxu0 %v2171
    %2475 = vmatpush.bf16.msra.mxu0 %v2167
    %2476 = vmatmul.bf16.gmra.mxu0 %v1546
    %v2477 = vpop.f32.mrf.mxu0
    %v2478 = vadd.f32 %v2465, %v2477
    %v2479 = vpop.f32.mrf.mxu0
    %2480 = vdwg.mxu0
    %2481 = vmatpush.bf16.msra.mxu0 %v2100
    %2482 = vmatpush.bf16.msra.mxu0 %v2096
    %2483 = vmatpush.bf16.msra.mxu0 %v2092
    %2484 = vmatpush.bf16.msra.mxu0 %v2088
    %2485 = vmatpush.bf16.msra.mxu0 %v2084
    %2486 = vmatpush.bf16.msra.mxu0 %v2080
    %2487 = vmatpush.bf16.msra.mxu0 %v2076
    %2488 = vmatpush.bf16.msra.mxu0 %v2072
    %2489 = vmatmul.bf16.gmra.mxu0 %v1543
    %v2490 = vpop.f32.mrf.mxu0
    %v2491 = vadd.f32 %v1680, %v2490
    %v2492 = vpop.f32.mrf.mxu0
    %2493 = vdwg.mxu0
    %2494 = vmatpush.bf16.msra.mxu0 %v2132
    %2495 = vmatpush.bf16.msra.mxu0 %v2128
    %2496 = vmatpush.bf16.msra.mxu0 %v2124
    %2497 = vmatpush.bf16.msra.mxu0 %v2120
    %2498 = vmatpush.bf16.msra.mxu0 %v2116
    %2499 = vmatpush.bf16.msra.mxu0 %v2112
    %2500 = vmatpush.bf16.msra.mxu0 %v2108
    %2501 = vmatpush.bf16.msra.mxu0 %v2104
    %2502 = vmatmul.bf16.gmra.mxu0 %v1544
    %v2503 = vpop.f32.mrf.mxu0
    %v2504 = vadd.f32 %v2491, %v2503
    %v2505 = vpop.f32.mrf.mxu0
    %2506 = vdwg.mxu0
    %2507 = vmatpush.bf16.msra.mxu0 %v2164
    %2508 = vmatpush.bf16.msra.mxu0 %v2160
    %2509 = vmatpush.bf16.msra.mxu0 %v2156
    %2510 = vmatpush.bf16.msra.mxu0 %v2152
    %2511 = vmatpush.bf16.msra.mxu0 %v2148
    %2512 = vmatpush.bf16.msra.mxu0 %v2144
    %2513 = vmatpush.bf16.msra.mxu0 %v2140
    %2514 = vmatpush.bf16.msra.mxu0 %v2136
    %2515 = vmatmul.bf16.gmra.mxu0 %v1545
    %v2516 = vpop.f32.mrf.mxu0
    %v2517 = vadd.f32 %v2504, %v2516
    %v2518 = vpop.f32.mrf.mxu0
    %2519 = vdwg.mxu0
    %2520 = vmatpush.bf16.msra.mxu0 %v2196
    %2521 = vmatpush.bf16.msra.mxu0 %v2192
    %2522 = vmatpush.bf16.msra.mxu0 %v2188
    %2523 = vmatpush.bf16.msra.mxu0 %v2184
    %2524 = vmatpush.bf16.msra.mxu0 %v2180
    %2525 = vmatpush.bf16.msra.mxu0 %v2176
    %2526 = vmatpush.bf16.msra.mxu0 %v2172
    %2527 = vmatpush.bf16.msra.mxu0 %v2168
    %2528 = vmatmul.bf16.gmra.mxu0 %v1546
    %v2529 = vpop.f32.mrf.mxu0
    %v2530 = vadd.f32 %v2517, %v2529
    %v2531 = vpop.f32.mrf.mxu0
    %2532 = vdwg.mxu0
    %v2533 = vmax.f32 %v2374, 0.0
    %v2534 = vmax.f32 %v2426, 0.0
    %v2535 = vmax.f32 %v2478, 0.0
    %v2536 = vmax.f32 %v2530, 0.0
    %v2537 = vpack.c.bf16 %v2533, %v2533
    %v2538 = vpack.c.bf16 %v2534, %v2534
    %v2539 = vpack.c.bf16 %v2535, %v2535
    %v2540 = vpack.c.bf16 %v2536, %v2536
    %v2541 = vld [vmem:[#allocation16] sm:$0xff]
    %v2542 = vld [vmem:[#allocation16 + $0x8] sm:$0xf]
    %v2543 = vld [vmem:[#allocation16 + $0xc] sm:$0xff]
    %v2544 = vld [vmem:[#allocation16 + $0x14] sm:$0xf]
    %v2545 = vld [vmem:[#allocation16 + $0x18] sm:$0xff]
    %v2546 = vld [vmem:[#allocation16 + $0x20] sm:$0xf]
    %v2547 = vld [vmem:[#allocation16 + $0x24] sm:$0xff]
    %v2548 = vld [vmem:[#allocation16 + $0x2c] sm:$0xf]
    %v2549 = vld [vmem:[#allocation16 + $0x30] sm:$0xff]
    %v2550 = vld [vmem:[#allocation16 + $0x38] sm:$0xf]
    %v2551 = vld [vmem:[#allocation16 + $0x3c] sm:$0xff]
    %v2552 = vld [vmem:[#allocation16 + $0x44] sm:$0xf]
    %v2553 = vld [vmem:[#allocation16 + $0x48] sm:$0xff]
    %v2554 = vld [vmem:[#allocation16 + $0x50] sm:$0xf]
    %v2555 = vld [vmem:[#allocation16 + $0x54] sm:$0xff]
    %v2556 = vld [vmem:[#allocation16 + $0x5c] sm:$0xf]
    %v2557 = vld [vmem:[#allocation16 + $0x60] sm:$0xff]
    %v2558 = vld [vmem:[#allocation16 + $0x68] sm:$0xf]
    %v2559 = vld [vmem:[#allocation16 + $0x6c] sm:$0xff]
    %v2560 = vld [vmem:[#allocation16 + $0x74] sm:$0xf]
    %v2561 = vld [vmem:[#allocation16 + $0x78] sm:$0xff]
    %v2562 = vld [vmem:[#allocation16 + $0x80] sm:$0xf]
    %v2563 = vld [vmem:[#allocation16 + $0x84] sm:$0xff]
    %v2564 = vld [vmem:[#allocation16 + $0x8c] sm:$0xf]
    %v2565 = vld [vmem:[#allocation16 + $0x90] sm:$0xff]
    %v2566 = vld [vmem:[#allocation16 + $0x98] sm:$0xf]
    %v2567 = vld [vmem:[#allocation16 + $0x9c] sm:$0xff]
    %v2568 = vld [vmem:[#allocation16 + $0xa4] sm:$0xf]
    %v2569 = vld [vmem:[#allocation16 + $0xa8] sm:$0xff]
    %v2570 = vld [vmem:[#allocation16 + $0xb0] sm:$0xf]
    %v2571 = vld [vmem:[#allocation16 + $0xb4] sm:$0xff]
    %v2572 = vld [vmem:[#allocation16 + $0xbc] sm:$0xf]
    %v2573 = vld [vmem:[#allocation16 + $0xc0] sm:$0xff]
    %v2574 = vld [vmem:[#allocation16 + $0xc8] sm:$0xf]
    %v2575 = vld [vmem:[#allocation16 + $0xcc] sm:$0xff]
    %v2576 = vld [vmem:[#allocation16 + $0xd4] sm:$0xf]
    %v2577 = vld [vmem:[#allocation16 + $0xd8] sm:$0xff]
    %v2578 = vld [vmem:[#allocation16 + $0xe0] sm:$0xf]
    %v2579 = vld [vmem:[#allocation16 + $0xe4] sm:$0xff]
    %v2580 = vld [vmem:[#allocation16 + $0xec] sm:$0xf]
    %v2581 = vld [vmem:[#allocation16 + $0xf0] sm:$0xff]
    %v2582 = vld [vmem:[#allocation16 + $0xf8] sm:$0xf]
    %v2583 = vld [vmem:[#allocation16 + $0xfc] sm:$0xff]
    %v2584 = vld [vmem:[#allocation16 + $0x104] sm:$0xf]
    %v2585 = vld [vmem:[#allocation16 + $0x108] sm:$0xff]
    %v2586 = vld [vmem:[#allocation16 + $0x110] sm:$0xf]
    %v2587 = vld [vmem:[#allocation16 + $0x114] sm:$0xff]
    %v2588 = vld [vmem:[#allocation16 + $0x11c] sm:$0xf]
    %v2589 = vld [vmem:[#allocation16 + $0x120] sm:$0xff]
    %v2590 = vld [vmem:[#allocation16 + $0x128] sm:$0xf]
    %v2591 = vld [vmem:[#allocation16 + $0x12c] sm:$0xff]
    %v2592 = vld [vmem:[#allocation16 + $0x134] sm:$0xf]
    %v2593 = vld [vmem:[#allocation16 + $0x138] sm:$0xff]
    %v2594 = vld [vmem:[#allocation16 + $0x140] sm:$0xf]
    %v2595 = vld [vmem:[#allocation16 + $0x144] sm:$0xff]
    %v2596 = vld [vmem:[#allocation16 + $0x14c] sm:$0xf]
    %v2597 = vld [vmem:[#allocation16 + $0x150] sm:$0xff]
    %v2598 = vld [vmem:[#allocation16 + $0x158] sm:$0xf]
    %v2599 = vld [vmem:[#allocation16 + $0x15c] sm:$0xff]
    %v2600 = vld [vmem:[#allocation16 + $0x164] sm:$0xf]
    %v2601 = vld [vmem:[#allocation16 + $0x168] sm:$0xff]
    %v2602 = vld [vmem:[#allocation16 + $0x170] sm:$0xf]
    %v2603 = vld [vmem:[#allocation16 + $0x174] sm:$0xff]
    %v2604 = vld [vmem:[#allocation16 + $0x17c] sm:$0xf]
    %v2605 = vld [vmem:[#allocation16 + $0x180] sm:$0xff]
    %v2606 = vld [vmem:[#allocation16 + $0x188] sm:$0xf]
    %v2607 = vld [vmem:[#allocation16 + $0x18c] sm:$0xff]
    %v2608 = vld [vmem:[#allocation16 + $0x194] sm:$0xf]
    %v2609 = vld [vmem:[#allocation16 + $0x198] sm:$0xff]
    %v2610 = vld [vmem:[#allocation16 + $0x1a0] sm:$0xf]
    %v2611 = vld [vmem:[#allocation16 + $0x1a4] sm:$0xff]
    %v2612 = vld [vmem:[#allocation16 + $0x1ac] sm:$0xf]
    %v2613 = vld [vmem:[#allocation16 + $0x1b0] sm:$0xff]
    %v2614 = vld [vmem:[#allocation16 + $0x1b8] sm:$0xf]
    %v2615 = vld [vmem:[#allocation16 + $0x1bc] sm:$0xff]
    %v2616 = vld [vmem:[#allocation16 + $0x1c4] sm:$0xf]
    %v2617 = vld [vmem:[#allocation16 + $0x1c8] sm:$0xff]
    %v2618 = vld [vmem:[#allocation16 + $0x1d0] sm:$0xf]
    %v2619 = vld [vmem:[#allocation16 + $0x1d4] sm:$0xff]
    %v2620 = vld [vmem:[#allocation16 + $0x1dc] sm:$0xf]
    %v2621 = vld [vmem:[#allocation16 + $0x1e0] sm:$0xff]
    %v2622 = vld [vmem:[#allocation16 + $0x1e8] sm:$0xf]
    %v2623 = vld [vmem:[#allocation16 + $0x1ec] sm:$0xff]
    %v2624 = vld [vmem:[#allocation16 + $0x1f4] sm:$0xf]
    %v2625 = vld [vmem:[#allocation16 + $0x1f8] sm:$0xff]
    %v2626 = vld [vmem:[#allocation16 + $0x200] sm:$0xf]
    %v2627 = vld [vmem:[#allocation16 + $0x204] sm:$0xff]
    %v2628 = vld [vmem:[#allocation16 + $0x20c] sm:$0xf]
    %v2629 = vld [vmem:[#allocation16 + $0x210] sm:$0xff]
    %v2630 = vld [vmem:[#allocation16 + $0x218] sm:$0xf]
    %v2631 = vld [vmem:[#allocation16 + $0x21c] sm:$0xff]
    %v2632 = vld [vmem:[#allocation16 + $0x224] sm:$0xf]
    %v2633 = vld [vmem:[#allocation16 + $0x228] sm:$0xff]
    %v2634 = vld [vmem:[#allocation16 + $0x230] sm:$0xf]
    %v2635 = vld [vmem:[#allocation16 + $0x234] sm:$0xff]
    %v2636 = vld [vmem:[#allocation16 + $0x23c] sm:$0xf]
    %v2637 = vld [vmem:[#allocation16 + $0x240] sm:$0xff]
    %v2638 = vld [vmem:[#allocation16 + $0x248] sm:$0xf]
    %v2639 = vld [vmem:[#allocation16 + $0x24c] sm:$0xff]
    %v2640 = vld [vmem:[#allocation16 + $0x254] sm:$0xf]
    %v2641 = vld [vmem:[#allocation16 + $0x258] sm:$0xff]
    %v2642 = vld [vmem:[#allocation16 + $0x260] sm:$0xf]
    %v2643 = vld [vmem:[#allocation16 + $0x264] sm:$0xff]
    %v2644 = vld [vmem:[#allocation16 + $0x26c] sm:$0xf]
    %v2645 = vld [vmem:[#allocation16 + $0x270] sm:$0xff]
    %v2646 = vld [vmem:[#allocation16 + $0x278] sm:$0xf]
    %v2647 = vld [vmem:[#allocation16 + $0x27c] sm:$0xff]
    %v2648 = vld [vmem:[#allocation16 + $0x284] sm:$0xf]
    %v2649 = vld [vmem:[#allocation16 + $0x288] sm:$0xff]
    %v2650 = vld [vmem:[#allocation16 + $0x290] sm:$0xf]
    %v2651 = vld [vmem:[#allocation16 + $0x294] sm:$0xff]
    %v2652 = vld [vmem:[#allocation16 + $0x29c] sm:$0xf]
    %v2653 = vld [vmem:[#allocation16 + $0x2a0] sm:$0xff]
    %v2654 = vld [vmem:[#allocation16 + $0x2a8] sm:$0xf]
    %v2655 = vld [vmem:[#allocation16 + $0x2ac] sm:$0xff]
    %v2656 = vld [vmem:[#allocation16 + $0x2b4] sm:$0xf]
    %v2657 = vld [vmem:[#allocation16 + $0x2b8] sm:$0xff]
    %v2658 = vld [vmem:[#allocation16 + $0x2c0] sm:$0xf]
    %v2659 = vld [vmem:[#allocation16 + $0x2c4] sm:$0xff]
    %v2660 = vld [vmem:[#allocation16 + $0x2cc] sm:$0xf]
    %v2661 = vld [vmem:[#allocation16 + $0x2d0] sm:$0xff]
    %v2662 = vld [vmem:[#allocation16 + $0x2d8] sm:$0xf]
    %v2663 = vld [vmem:[#allocation16 + $0x2dc] sm:$0xff]
    %v2664 = vld [vmem:[#allocation16 + $0x2e4] sm:$0xf]
    %v2665 = vld [vmem:[#allocation16 + $0x2e8] sm:$0xff]
    %v2666 = vld [vmem:[#allocation16 + $0x2f0] sm:$0xf]
    %v2667 = vld [vmem:[#allocation16 + $0x2f4] sm:$0xff]
    %v2668 = vld [vmem:[#allocation16 + $0x2fc] sm:$0xf]
    %v2669 = vld [vmem:[%s18] sm:$0x7]
    %v2671 = vperm.slane %v2669, 0
    %v2672 = vperm.slane %v2669, 1
    %v2673 = vperm.slane %v2669, 2
    %v2805 = vunpack.c.l.b16 %v2541
    %v2806 = vunpack.c.h.b16 %v2541
    %v2807 = vunpack.c.l.b16 %v2542
    %v2808 = vunpack.c.l.b16 %v2543
    %v2809 = vunpack.c.h.b16 %v2543
    %v2810 = vunpack.c.l.b16 %v2544
    %v2811 = vunpack.c.l.b16 %v2545
    %v2812 = vunpack.c.h.b16 %v2545
    %v2813 = vunpack.c.l.b16 %v2546
    %v2814 = vunpack.c.l.b16 %v2547
    %v2815 = vunpack.c.h.b16 %v2547
    %v2816 = vunpack.c.l.b16 %v2548
    %v2817 = vunpack.c.l.b16 %v2549
    %v2818 = vunpack.c.h.b16 %v2549
    %v2819 = vunpack.c.l.b16 %v2550
    %v2820 = vunpack.c.l.b16 %v2551
    %v2821 = vunpack.c.h.b16 %v2551
    %v2822 = vunpack.c.l.b16 %v2552
    %v2823 = vunpack.c.l.b16 %v2553
    %v2824 = vunpack.c.h.b16 %v2553
    %v2825 = vunpack.c.l.b16 %v2554
    %v2826 = vunpack.c.l.b16 %v2555
    %v2827 = vunpack.c.h.b16 %v2555
    %v2828 = vunpack.c.l.b16 %v2556
    %v2829 = vunpack.c.l.b16 %v2557
    %v2830 = vunpack.c.h.b16 %v2557
    %v2831 = vunpack.c.l.b16 %v2558
    %v2832 = vunpack.c.l.b16 %v2559
    %v2833 = vunpack.c.h.b16 %v2559
    %v2834 = vunpack.c.l.b16 %v2560
    %v2835 = vunpack.c.l.b16 %v2561
    %v2836 = vunpack.c.h.b16 %v2561
    %v2837 = vunpack.c.l.b16 %v2562
    %v2838 = vunpack.c.l.b16 %v2563
    %v2839 = vunpack.c.h.b16 %v2563
    %v2840 = vunpack.c.l.b16 %v2564
    %v2841 = vunpack.c.l.b16 %v2565
    %v2842 = vunpack.c.h.b16 %v2565
    %v2843 = vunpack.c.l.b16 %v2566
    %v2844 = vunpack.c.l.b16 %v2567
    %v2845 = vunpack.c.h.b16 %v2567
    %v2846 = vunpack.c.l.b16 %v2568
    %v2847 = vunpack.c.l.b16 %v2569
    %v2848 = vunpack.c.h.b16 %v2569
    %v2849 = vunpack.c.l.b16 %v2570
    %v2850 = vunpack.c.l.b16 %v2571
    %v2851 = vunpack.c.h.b16 %v2571
    %v2852 = vunpack.c.l.b16 %v2572
    %v2853 = vunpack.c.l.b16 %v2573
    %v2854 = vunpack.c.h.b16 %v2573
    %v2855 = vunpack.c.l.b16 %v2574
    %v2856 = vunpack.c.l.b16 %v2575
    %v2857 = vunpack.c.h.b16 %v2575
    %v2858 = vunpack.c.l.b16 %v2576
    %v2859 = vunpack.c.l.b16 %v2577
    %v2860 = vunpack.c.h.b16 %v2577
    %v2861 = vunpack.c.l.b16 %v2578
    %v2862 = vunpack.c.l.b16 %v2579
    %v2863 = vunpack.c.h.b16 %v2579
    %v2864 = vunpack.c.l.b16 %v2580
    %v2865 = vunpack.c.l.b16 %v2581
    %v2866 = vunpack.c.h.b16 %v2581
    %v2867 = vunpack.c.l.b16 %v2582
    %v2868 = vunpack.c.l.b16 %v2583
    %v2869 = vunpack.c.h.b16 %v2583
    %v2870 = vunpack.c.l.b16 %v2584
    %v2871 = vunpack.c.l.b16 %v2585
    %v2872 = vunpack.c.h.b16 %v2585
    %v2873 = vunpack.c.l.b16 %v2586
    %v2874 = vunpack.c.l.b16 %v2587
    %v2875 = vunpack.c.h.b16 %v2587
    %v2876 = vunpack.c.l.b16 %v2588
    %v2877 = vunpack.c.l.b16 %v2589
    %v2878 = vunpack.c.h.b16 %v2589
    %v2879 = vunpack.c.l.b16 %v2590
    %v2880 = vunpack.c.l.b16 %v2591
    %v2881 = vunpack.c.h.b16 %v2591
    %v2882 = vunpack.c.l.b16 %v2592
    %v2883 = vunpack.c.l.b16 %v2593
    %v2884 = vunpack.c.h.b16 %v2593
    %v2885 = vunpack.c.l.b16 %v2594
    %v2886 = vunpack.c.l.b16 %v2595
    %v2887 = vunpack.c.h.b16 %v2595
    %v2888 = vunpack.c.l.b16 %v2596
    %v2889 = vunpack.c.l.b16 %v2597
    %v2890 = vunpack.c.h.b16 %v2597
    %v2891 = vunpack.c.l.b16 %v2598
    %v2892 = vunpack.c.l.b16 %v2599
    %v2893 = vunpack.c.h.b16 %v2599
    %v2894 = vunpack.c.l.b16 %v2600
    %v2895 = vunpack.c.l.b16 %v2601
    %v2896 = vunpack.c.h.b16 %v2601
    %v2897 = vunpack.c.l.b16 %v2602
    %v2898 = vunpack.c.l.b16 %v2603
    %v2899 = vunpack.c.h.b16 %v2603
    %v2900 = vunpack.c.l.b16 %v2604
    %v2901 = vunpack.c.l.b16 %v2605
    %v2902 = vunpack.c.h.b16 %v2605
    %v2903 = vunpack.c.l.b16 %v2606
    %v2904 = vunpack.c.l.b16 %v2607
    %v2905 = vunpack.c.h.b16 %v2607
    %v2906 = vunpack.c.l.b16 %v2608
    %v2907 = vunpack.c.l.b16 %v2609
    %v2908 = vunpack.c.h.b16 %v2609
    %v2909 = vunpack.c.l.b16 %v2610
    %v2910 = vunpack.c.l.b16 %v2611
    %v2911 = vunpack.c.h.b16 %v2611
    %v2912 = vunpack.c.l.b16 %v2612
    %v2913 = vunpack.c.l.b16 %v2613
    %v2914 = vunpack.c.h.b16 %v2613
    %v2915 = vunpack.c.l.b16 %v2614
    %v2916 = vunpack.c.l.b16 %v2615
    %v2917 = vunpack.c.h.b16 %v2615
    %v2918 = vunpack.c.l.b16 %v2616
    %v2919 = vunpack.c.l.b16 %v2617
    %v2920 = vunpack.c.h.b16 %v2617
    %v2921 = vunpack.c.l.b16 %v2618
    %v2922 = vunpack.c.l.b16 %v2619
    %v2923 = vunpack.c.h.b16 %v2619
    %v2924 = vunpack.c.l.b16 %v2620
    %v2925 = vunpack.c.l.b16 %v2621
    %v2926 = vunpack.c.h.b16 %v2621
    %v2927 = vunpack.c.l.b16 %v2622
    %v2928 = vunpack.c.l.b16 %v2623
    %v2929 = vunpack.c.h.b16 %v2623
    %v2930 = vunpack.c.l.b16 %v2624
    %v2931 = vunpack.c.l.b16 %v2625
    %v2932 = vunpack.c.h.b16 %v2625
    %v2933 = vunpack.c.l.b16 %v2626
    %v2934 = vunpack.c.l.b16 %v2627
    %v2935 = vunpack.c.h.b16 %v2627
    %v2936 = vunpack.c.l.b16 %v2628
    %v2937 = vunpack.c.l.b16 %v2629
    %v2938 = vunpack.c.h.b16 %v2629
    %v2939 = vunpack.c.l.b16 %v2630
    %v2940 = vunpack.c.l.b16 %v2631
    %v2941 = vunpack.c.h.b16 %v2631
    %v2942 = vunpack.c.l.b16 %v2632
    %v2943 = vunpack.c.l.b16 %v2633
    %v2944 = vunpack.c.h.b16 %v2633
    %v2945 = vunpack.c.l.b16 %v2634
    %v2946 = vunpack.c.l.b16 %v2635
    %v2947 = vunpack.c.h.b16 %v2635
    %v2948 = vunpack.c.l.b16 %v2636
    %v2949 = vunpack.c.l.b16 %v2637
    %v2950 = vunpack.c.h.b16 %v2637
    %v2951 = vunpack.c.l.b16 %v2638
    %v2952 = vunpack.c.l.b16 %v2639
    %v2953 = vunpack.c.h.b16 %v2639
    %v2954 = vunpack.c.l.b16 %v2640
    %v2955 = vunpack.c.l.b16 %v2641
    %v2956 = vunpack.c.h.b16 %v2641
    %v2957 = vunpack.c.l.b16 %v2642
    %v2958 = vunpack.c.l.b16 %v2643
    %v2959 = vunpack.c.h.b16 %v2643
    %v2960 = vunpack.c.l.b16 %v2644
    %v2961 = vunpack.c.l.b16 %v2645
    %v2962 = vunpack.c.h.b16 %v2645
    %v2963 = vunpack.c.l.b16 %v2646
    %v2964 = vunpack.c.l.b16 %v2647
    %v2965 = vunpack.c.h.b16 %v2647
    %v2966 = vunpack.c.l.b16 %v2648
    %v2967 = vunpack.c.l.b16 %v2649
    %v2968 = vunpack.c.h.b16 %v2649
    %v2969 = vunpack.c.l.b16 %v2650
    %v2970 = vunpack.c.l.b16 %v2651
    %v2971 = vunpack.c.h.b16 %v2651
    %v2972 = vunpack.c.l.b16 %v2652
    %v2973 = vunpack.c.l.b16 %v2653
    %v2974 = vunpack.c.h.b16 %v2653
    %v2975 = vunpack.c.l.b16 %v2654
    %v2976 = vunpack.c.l.b16 %v2655
    %v2977 = vunpack.c.h.b16 %v2655
    %v2978 = vunpack.c.l.b16 %v2656
    %v2979 = vunpack.c.l.b16 %v2657
    %v2980 = vunpack.c.h.b16 %v2657
    %v2981 = vunpack.c.l.b16 %v2658
    %v2982 = vunpack.c.l.b16 %v2659
    %v2983 = vunpack.c.h.b16 %v2659
    %v2984 = vunpack.c.l.b16 %v2660
    %v2985 = vunpack.c.l.b16 %v2661
    %v2986 = vunpack.c.h.b16 %v2661
    %v2987 = vunpack.c.l.b16 %v2662
    %v2988 = vunpack.c.l.b16 %v2663
    %v2989 = vunpack.c.h.b16 %v2663
    %v2990 = vunpack.c.l.b16 %v2664
    %v2991 = vunpack.c.l.b16 %v2665
    %v2992 = vunpack.c.h.b16 %v2665
    %v2993 = vunpack.c.l.b16 %v2666
    %v2994 = vunpack.c.l.b16 %v2667
    %v2995 = vunpack.c.h.b16 %v2667
    %v2996 = vunpack.c.l.b16 %v2668
    %v2997 = vpack.c.b16 %v2808, %v2805
    %v2998 = vpack.c.b16 %v2809, %v2806
    %v2999 = vpack.c.b16 %v2810, %v2807
    %v3000 = vpack.c.b16 %v2814, %v2811
    %v3001 = vpack.c.b16 %v2815, %v2812
    %v3002 = vpack.c.b16 %v2816, %v2813
    %v3003 = vpack.c.b16 %v2820, %v2817
    %v3004 = vpack.c.b16 %v2821, %v2818
    %v3005 = vpack.c.b16 %v2822, %v2819
    %v3006 = vpack.c.b16 %v2826, %v2823
    %v3007 = vpack.c.b16 %v2827, %v2824
    %v3008 = vpack.c.b16 %v2828, %v2825
    %v3009 = vpack.c.b16 %v2832, %v2829
    %v3010 = vpack.c.b16 %v2833, %v2830
    %v3011 = vpack.c.b16 %v2834, %v2831
    %v3012 = vpack.c.b16 %v2838, %v2835
    %v3013 = vpack.c.b16 %v2839, %v2836
    %v3014 = vpack.c.b16 %v2840, %v2837
    %v3015 = vpack.c.b16 %v2844, %v2841
    %v3016 = vpack.c.b16 %v2845, %v2842
    %v3017 = vpack.c.b16 %v2846, %v2843
    %v3018 = vpack.c.b16 %v2850, %v2847
    %v3019 = vpack.c.b16 %v2851, %v2848
    %v3020 = vpack.c.b16 %v2852, %v2849
    %v3021 = vpack.c.b16 %v2856, %v2853
    %v3022 = vpack.c.b16 %v2857, %v2854
    %v3023 = vpack.c.b16 %v2858, %v2855
    %v3024 = vpack.c.b16 %v2862, %v2859
    %v3025 = vpack.c.b16 %v2863, %v2860
    %v3026 = vpack.c.b16 %v2864, %v2861
    %v3027 = vpack.c.b16 %v2868, %v2865
    %v3028 = vpack.c.b16 %v2869, %v2866
    %v3029 = vpack.c.b16 %v2870, %v2867
    %v3030 = vpack.c.b16 %v2874, %v2871
    %v3031 = vpack.c.b16 %v2875, %v2872
    %v3032 = vpack.c.b16 %v2876, %v2873
    %v3033 = vpack.c.b16 %v2880, %v2877
    %v3034 = vpack.c.b16 %v2881, %v2878
    %v3035 = vpack.c.b16 %v2882, %v2879
    %v3036 = vpack.c.b16 %v2886, %v2883
    %v3037 = vpack.c.b16 %v2887, %v2884
    %v3038 = vpack.c.b16 %v2888, %v2885
    %v3039 = vpack.c.b16 %v2892, %v2889
    %v3040 = vpack.c.b16 %v2893, %v2890
    %v3041 = vpack.c.b16 %v2894, %v2891
    %v3042 = vpack.c.b16 %v2898, %v2895
    %v3043 = vpack.c.b16 %v2899, %v2896
    %v3044 = vpack.c.b16 %v2900, %v2897
    %v3045 = vpack.c.b16 %v2904, %v2901
    %v3046 = vpack.c.b16 %v2905, %v2902
    %v3047 = vpack.c.b16 %v2906, %v2903
    %v3048 = vpack.c.b16 %v2910, %v2907
    %v3049 = vpack.c.b16 %v2911, %v2908
    %v3050 = vpack.c.b16 %v2912, %v2909
    %v3051 = vpack.c.b16 %v2916, %v2913
    %v3052 = vpack.c.b16 %v2917, %v2914
    %v3053 = vpack.c.b16 %v2918, %v2915
    %v3054 = vpack.c.b16 %v2922, %v2919
    %v3055 = vpack.c.b16 %v2923, %v2920
    %v3056 = vpack.c.b16 %v2924, %v2921
    %v3057 = vpack.c.b16 %v2928, %v2925
    %v3058 = vpack.c.b16 %v2929, %v2926
    %v3059 = vpack.c.b16 %v2930, %v2927
    %v3060 = vpack.c.b16 %v2934, %v2931
    %v3061 = vpack.c.b16 %v2935, %v2932
    %v3062 = vpack.c.b16 %v2936, %v2933
    %v3063 = vpack.c.b16 %v2940, %v2937
    %v3064 = vpack.c.b16 %v2941, %v2938
    %v3065 = vpack.c.b16 %v2942, %v2939
    %v3066 = vpack.c.b16 %v2946, %v2943
    %v3067 = vpack.c.b16 %v2947, %v2944
    %v3068 = vpack.c.b16 %v2948, %v2945
    %v3069 = vpack.c.b16 %v2952, %v2949
    %v3070 = vpack.c.b16 %v2953, %v2950
    %v3071 = vpack.c.b16 %v2954, %v2951
    %v3072 = vpack.c.b16 %v2958, %v2955
    %v3073 = vpack.c.b16 %v2959, %v2956
    %v3074 = vpack.c.b16 %v2960, %v2957
    %v3075 = vpack.c.b16 %v2964, %v2961
    %v3076 = vpack.c.b16 %v2965, %v2962
    %v3077 = vpack.c.b16 %v2966, %v2963
    %v3078 = vpack.c.b16 %v2970, %v2967
    %v3079 = vpack.c.b16 %v2971, %v2968
    %v3080 = vpack.c.b16 %v2972, %v2969
    %v3081 = vpack.c.b16 %v2976, %v2973
    %v3082 = vpack.c.b16 %v2977, %v2974
    %v3083 = vpack.c.b16 %v2978, %v2975
    %v3084 = vpack.c.b16 %v2982, %v2979
    %v3085 = vpack.c.b16 %v2983, %v2980
    %v3086 = vpack.c.b16 %v2984, %v2981
    %v3087 = vpack.c.b16 %v2988, %v2985
    %v3088 = vpack.c.b16 %v2989, %v2986
    %v3089 = vpack.c.b16 %v2990, %v2987
    %v3090 = vpack.c.b16 %v2994, %v2991
    %v3091 = vpack.c.b16 %v2995, %v2992
    %v3092 = vpack.c.b16 %v2996, %v2993
    %3189 = vmatpush.bf16.msra.mxu0 %v3018
    %3190 = vmatpush.bf16.msra.mxu0 %v3015
    %3191 = vmatpush.bf16.msra.mxu0 %v3012
    %3192 = vmatpush.bf16.msra.mxu0 %v3009
    %3193 = vmatpush.bf16.msra.mxu0 %v3006
    %3194 = vmatpush.bf16.msra.mxu0 %v3003
    %3195 = vmatpush.bf16.msra.mxu0 %v3000
    %3196 = vmatpush.bf16.msra.mxu0 %v2997
    %3197 = vmatmul.bf16.gmra.mxu0 %v2537
    %v3198 = vpop.f32.mrf.mxu0
    %v3199 = vadd.f32 %v2671, %v3198
    %v3200 = vpop.f32.mrf.mxu0
    %3201 = vdwg.mxu0
    %3202 = vmatpush.bf16.msra.mxu0 %v3042
    %3203 = vmatpush.bf16.msra.mxu0 %v3039
    %3204 = vmatpush.bf16.msra.mxu0 %v3036
    %3205 = vmatpush.bf16.msra.mxu0 %v3033
    %3206 = vmatpush.bf16.msra.mxu0 %v3030
    %3207 = vmatpush.bf16.msra.mxu0 %v3027
    %3208 = vmatpush.bf16.msra.mxu0 %v3024
    %3209 = vmatpush.bf16.msra.mxu0 %v3021
    %3210 = vmatmul.bf16.gmra.mxu0 %v2538
    %v3211 = vpop.f32.mrf.mxu0
    %v3212 = vadd.f32 %v3199, %v3211
    %v3213 = vpop.f32.mrf.mxu0
    %3214 = vdwg.mxu0
    %3215 = vmatpush.bf16.msra.mxu0 %v3066
    %3216 = vmatpush.bf16.msra.mxu0 %v3063
    %3217 = vmatpush.bf16.msra.mxu0 %v3060
    %3218 = vmatpush.bf16.msra.mxu0 %v3057
    %3219 = vmatpush.bf16.msra.mxu0 %v3054
    %3220 = vmatpush.bf16.msra.mxu0 %v3051
    %3221 = vmatpush.bf16.msra.mxu0 %v3048
    %3222 = vmatpush.bf16.msra.mxu0 %v3045
    %3223 = vmatmul.bf16.gmra.mxu0 %v2539
    %v3224 = vpop.f32.mrf.mxu0
    %v3225 = vadd.f32 %v3212, %v3224
    %v3226 = vpop.f32.mrf.mxu0
    %3227 = vdwg.mxu0
    %3228 = vmatpush.bf16.msra.mxu0 %v3090
    %3229 = vmatpush.bf16.msra.mxu0 %v3087
    %3230 = vmatpush.bf16.msra.mxu0 %v3084
    %3231 = vmatpush.bf16.msra.mxu0 %v3081
    %3232 = vmatpush.bf16.msra.mxu0 %v3078
    %3233 = vmatpush.bf16.msra.mxu0 %v3075
    %3234 = vmatpush.bf16.msra.mxu0 %v3072
    %3235 = vmatpush.bf16.msra.mxu0 %v3069
    %3236 = vmatmul.bf16.gmra.mxu0 %v2540
    %v3237 = vpop.f32.mrf.mxu0
    %v3238 = vadd.f32 %v3225, %v3237
    %v3239 = vpop.f32.mrf.mxu0
    %3240 = vdwg.mxu0
    %3241 = vmatpush.bf16.msra.mxu0 %v3019
    %3242 = vmatpush.bf16.msra.mxu0 %v3016
    %3243 = vmatpush.bf16.msra.mxu0 %v3013
    %3244 = vmatpush.bf16.msra.mxu0 %v3010
    %3245 = vmatpush.bf16.msra.mxu0 %v3007
    %3246 = vmatpush.bf16.msra.mxu0 %v3004
    %3247 = vmatpush.bf16.msra.mxu0 %v3001
    %3248 = vmatpush.bf16.msra.mxu0 %v2998
    %3249 = vmatmul.bf16.gmra.mxu0 %v2537
    %v3250 = vpop.f32.mrf.mxu0
    %v3251 = vadd.f32 %v2672, %v3250
    %v3252 = vpop.f32.mrf.mxu0
    %3253 = vdwg.mxu0
    %3254 = vmatpush.bf16.msra.mxu0 %v3043
    %3255 = vmatpush.bf16.msra.mxu0 %v3040
    %3256 = vmatpush.bf16.msra.mxu0 %v3037
    %3257 = vmatpush.bf16.msra.mxu0 %v3034
    %3258 = vmatpush.bf16.msra.mxu0 %v3031
    %3259 = vmatpush.bf16.msra.mxu0 %v3028
    %3260 = vmatpush.bf16.msra.mxu0 %v3025
    %3261 = vmatpush.bf16.msra.mxu0 %v3022
    %3262 = vmatmul.bf16.gmra.mxu0 %v2538
    %v3263 = vpop.f32.mrf.mxu0
    %v3264 = vadd.f32 %v3251, %v3263
    %v3265 = vpop.f32.mrf.mxu0
    %3266 = vdwg.mxu0
    %3267 = vmatpush.bf16.msra.mxu0 %v3067
    %3268 = vmatpush.bf16.msra.mxu0 %v3064
    %3269 = vmatpush.bf16.msra.mxu0 %v3061
    %3270 = vmatpush.bf16.msra.mxu0 %v3058
    %3271 = vmatpush.bf16.msra.mxu0 %v3055
    %3272 = vmatpush.bf16.msra.mxu0 %v3052
    %3273 = vmatpush.bf16.msra.mxu0 %v3049
    %3274 = vmatpush.bf16.msra.mxu0 %v3046
    %3275 = vmatmul.bf16.gmra.mxu0 %v2539
    %v3276 = vpop.f32.mrf.mxu0
    %v3277 = vadd.f32 %v3264, %v3276
    %v3278 = vpop.f32.mrf.mxu0
    %3279 = vdwg.mxu0
    %3280 = vmatpush.bf16.msra.mxu0 %v3091
    %3281 = vmatpush.bf16.msra.mxu0 %v3088
    %3282 = vmatpush.bf16.msra.mxu0 %v3085
    %3283 = vmatpush.bf16.msra.mxu0 %v3082
    %3284 = vmatpush.bf16.msra.mxu0 %v3079
    %3285 = vmatpush.bf16.msra.mxu0 %v3076
    %3286 = vmatpush.bf16.msra.mxu0 %v3073
    %3287 = vmatpush.bf16.msra.mxu0 %v3070
    %3288 = vmatmul.bf16.gmra.mxu0 %v2540
    %v3289 = vpop.f32.mrf.mxu0
    %v3290 = vadd.f32 %v3277, %v3289
    %v3291 = vpop.f32.mrf.mxu0
    %3292 = vdwg.mxu0
    %3293 = vmatpush.bf16.msra.mxu0 %v3020
    %3294 = vmatpush.bf16.msra.mxu0 %v3017
    %3295 = vmatpush.bf16.msra.mxu0 %v3014
    %3296 = vmatpush.bf16.msra.mxu0 %v3011
    %3297 = vmatpush.bf16.msra.mxu0 %v3008
    %3298 = vmatpush.bf16.msra.mxu0 %v3005
    %3299 = vmatpush.bf16.msra.mxu0 %v3002
    %3300 = vmatpush.bf16.msra.mxu0 %v2999
    %3301 = vmatmul.bf16.gmra.mxu0 %v2537
    %v3302 = vpop.f32.mrf.mxu0
    %v3303 = vadd.f32 %v2673, %v3302
    %v3304 = vpop.f32.mrf.mxu0
    %3305 = vdwg.mxu0
    %3306 = vmatpush.bf16.msra.mxu0 %v3044
    %3307 = vmatpush.bf16.msra.mxu0 %v3041
    %3308 = vmatpush.bf16.msra.mxu0 %v3038
    %3309 = vmatpush.bf16.msra.mxu0 %v3035
    %3310 = vmatpush.bf16.msra.mxu0 %v3032
    %3311 = vmatpush.bf16.msra.mxu0 %v3029
    %3312 = vmatpush.bf16.msra.mxu0 %v3026
    %3313 = vmatpush.bf16.msra.mxu0 %v3023
    %3314 = vmatmul.bf16.gmra.mxu0 %v2538
    %v3315 = vpop.f32.mrf.mxu0
    %v3316 = vadd.f32 %v3303, %v3315
    %v3317 = vpop.f32.mrf.mxu0
    %3318 = vdwg.mxu0
    %3319 = vmatpush.bf16.msra.mxu0 %v3068
    %3320 = vmatpush.bf16.msra.mxu0 %v3065
    %3321 = vmatpush.bf16.msra.mxu0 %v3062
    %3322 = vmatpush.bf16.msra.mxu0 %v3059
    %3323 = vmatpush.bf16.msra.mxu0 %v3056
    %3324 = vmatpush.bf16.msra.mxu0 %v3053
    %3325 = vmatpush.bf16.msra.mxu0 %v3050
    %3326 = vmatpush.bf16.msra.mxu0 %v3047
    %3327 = vmatmul.bf16.gmra.mxu0 %v2539
    %v3328 = vpop.f32.mrf.mxu0
    %v3329 = vadd.f32 %v3316, %v3328
    %v3330 = vpop.f32.mrf.mxu0
    %3331 = vdwg.mxu0
    %3332 = vmatpush.bf16.msra.mxu0 %v3092
    %3333 = vmatpush.bf16.msra.mxu0 %v3089
    %3334 = vmatpush.bf16.msra.mxu0 %v3086
    %3335 = vmatpush.bf16.msra.mxu0 %v3083
    %3336 = vmatpush.bf16.msra.mxu0 %v3080
    %3337 = vmatpush.bf16.msra.mxu0 %v3077
    %3338 = vmatpush.bf16.msra.mxu0 %v3074
    %3339 = vmatpush.bf16.msra.mxu0 %v3071
    %3340 = vmatmul.bf16.gmra.mxu0 %v2540
    %v3341 = vpop.f32.mrf.mxu0
    %v3342 = vadd.f32 %v3329, %v3341
    %v3343 = vpop.f32.mrf.mxu0
    %3344 = vdwg.mxu0
    %v3345 = vtanh.pop %v3238
    %v3346 = vtanh.pop %v3290
    %v3347 = vtanh.pop %v3342
    %v3351 = vrot.slane %v3346, 6
    %v3352 = vrot.slane %v3347, 4
    %v3353 = vsel %vm466, %v3345, %v3351
    %vm3354 = vcmask 1043456
    %v3355 = vsel %vm3354, %v3353, %v3352
    %3357 = vst [vmem:[%s19] sm:$0x3f] %v3355
    // Predicated region
    $region118: #{_lambda_.1} parent=1 // pred_check
      _
    $region119: #{_lambda_.1} parent=1 // pred_check_branch
      %3359 = sbr.rel (0) target = $region121
    $region120: #{_lambda_.1} parent=1 // pred_region
      _
    $region121: #{_lambda_.1} parent=1 // pred_fallthru
      _
    // Predicated region
    $region122: #{_lambda_.1} parent=1 // pred_check
      _
    $region123: #{_lambda_.1} parent=1 // pred_check_branch
      %3361 = sbr.rel (0) target = $region125
    $region124: #{_lambda_.1} parent=1 // pred_region
      _
    $region125: #{_lambda_.1} parent=1 // pred_fallthru
      _
    %3362 = vsyncpa [#allocation3], 1
    %3363 = vsyncpa [#allocation5], 1
    %3364 = vsyncpa [#allocation8], 1
    %3365 = vsyncpa [#allocation11], 1
    %3366 = vsyncpa [#allocation14], 1
    %3367 = vsyncpa [#allocation17], 1

</llo_original>
